<compile_context>
chip_gen: v7x
topology: tpu7x:2x2x1
jax: 0.10.0
libtpu: 0.0.40
codegen_flags: <defaults>
</compile_context>

<pallas_src>
import functools
import math

import jax
import jax.numpy as jnp
from jax.experimental import pallas as pl
from jax.experimental.pallas import tpu as pltpu

NH = 512            # hidden width (nh in the PyTorch module)
DM_D = 10           # number of repeated domain-index channels
OUT_PAD = 128       # lane-dense padding of the 1-wide logit output
BN_EPS = 1e-5
LEAKY_SLOPE = 0.01  # nn.LeakyReLU() default


def _round_up(x, m):
    return (x + m - 1) // m * m


def _cdiv(a, b):
    return (a + b - 1) // b


def _mxu_m_align():
    """MXU M-alignment: v5e's MXU is 4x128^2 (128 rows saturate it); v6e/v7x
    use 256x256 tiles, so 256-aligned M keeps them fully occupied."""
    try:
        kind = jax.devices()[0].device_kind.lower()
    except Exception:
        return 256
    if "v5 lite" in kind or "v5e" in kind or "v5litepod" in kind:
        return 128
    return 256


def _choose_tile(B, align):
    """Pick the batch row tile.

    * B <= align: one grid step (small-batch regime is weight-DMA bound, so M
      alignment buys nothing); pad only to a 16-row boundary (bf16 sublanes).
    * moderate B: guarantee >= 2 parallel grid steps (v7x dual TensorCore)
      with an MXU-aligned M.
    * large B: cap the tile at 4*align (<= 1024 rows) -- per-step buffers stay
      well under the VMEM limit and the ~0.35 us/step overhead is amortized.
    """
    if B <= align:
        return _round_up(max(B, 16), 16)
    if B <= 8 * align:
        return _round_up(_cdiv(B, 2), align)
    return 4 * align


# ---------------------------------------------------------------------------
# Pallas kernel: fused 4-layer forward (BN already folded into W/b).
#   h1     = leaky( x @ W1 + dm * w1_dm + b1 )
#   h2     = leaky( h1 @ W2 + b2 )
#   h3     = leaky( h2 @ W3 + b3 )
#   logits = h3 @ Wl + bl            (128-wide padded, col 0 is real)
# Sigmoid is applied in the wrapper on the (B, 1) slice.
# ---------------------------------------------------------------------------
def _mnist_dis_kernel(x_ref, dm_ref,
                      w1_ref, w1dm_ref, b1_ref,
                      w2_ref, b2_ref,
                      w3_ref, b3_ref,
                      wl_ref, bl_ref,
                      out_ref):
    x = x_ref[...]                       # (TB, nz)  bf16
    dm = dm_ref[...]                     # (TB, 1)   f32

    # Layer 1: the 10 identical domain channels are folded to dm * sum(rows).
    h = jnp.dot(x, w1_ref[...], preferred_element_type=jnp.float32)
    h = h + dm * w1dm_ref[...] + b1_ref[...]
    h = jnp.maximum(h, LEAKY_SLOPE * h)

    h = jnp.dot(h.astype(jnp.bfloat16), w2_ref[...],
                preferred_element_type=jnp.float32) + b2_ref[...]
    h = jnp.maximum(h, LEAKY_SLOPE * h)

    h = jnp.dot(h.astype(jnp.bfloat16), w3_ref[...],
                preferred_element_type=jnp.float32) + b3_ref[...]
    h = jnp.maximum(h, LEAKY_SLOPE * h)

    # Lane-dense (TB, 128) store of raw logits; only column 0 is meaningful.
    out_ref[...] = jnp.dot(h.astype(jnp.bfloat16), wl_ref[...],
                           preferred_element_type=jnp.float32) + bl_ref[...]


# ---------------------------------------------------------------------------
# Parameter preparation: fold eval-mode BN, split W1 (image vs domain part),
# pre-cast matmul weights to bf16, pad the final Linear to a 128-wide output.
# ---------------------------------------------------------------------------
def prepare_params(raw_params, *, nz):
    (W1, c1, g1, be1, m1, v1), (W2, c2, g2, be2, m2, v2), \
        (W3, c3, g3, be3, m3, v3), (Wl, cl) = raw_params

    def fold(W, c, g, be, m, v):
        s = g / jnp.sqrt(v + BN_EPS)                   # (nh,)
        Wf = (W * s[:, None]).T                        # (in, nh) f32
        bf = ((c - m) * s + be).reshape(1, -1)         # (1, nh)  f32
        return Wf, bf

    W1f, b1 = fold(W1, c1, g1, be1, m1, v1)            # (nz + DM_D, nh)
    w1 = W1f[:nz].astype(jnp.bfloat16)                 # image part (bf16, MXU)
    # All DM_D domain channels carry the same per-row value -> collapse.
    w1dm = jnp.sum(W1f[nz:], axis=0, keepdims=True)    # (1, nh) f32

    W2f, b2 = fold(W2, c2, g2, be2, m2, v2)
    W3f, b3 = fold(W3, c3, g3, be3, m3, v3)
    w2 = W2f.astype(jnp.bfloat16)
    w3 = W3f.astype(jnp.bfloat16)

    wl = jnp.zeros((NH, OUT_PAD), jnp.float32).at[:, :1].set(Wl.T)
    wl = wl.astype(jnp.bfloat16)
    bl = jnp.zeros((1, OUT_PAD), jnp.float32).at[:, :1].set(cl.reshape(1, 1))

    return (w1, w1dm, b1, w2, b2, w3, b3, wl, bl)


# ---------------------------------------------------------------------------
# Forward wrapper.
# ---------------------------------------------------------------------------
@functools.partial(jax.jit, static_argnames=("domain_num",))
def mnist_dis_forward(x, domain_index, prepared, *, domain_num):
    """MNIST_Dis.forward(x, domain_index) with eval-mode BN -> (B, 1)."""
    if domain_num <= 1:
        # The PyTorch module divides by (domain_num - 1); refuse to emit NaNs.
        raise ValueError("domain_num must be >= 2 (module divides by domain_num - 1)")

    B, nz, hh, ww = x.shape
    # The module is only valid for 1x1 spatial inputs (the 28x28 docstring in
    # the original is unreachable given nnSqueeze + Linear(512, 1)).
    assert hh == 1 and ww == 1

    dm = domain_index.reshape(-1, 1).astype(jnp.float32) / float(domain_num - 1)
    xf = x.reshape(B, nz).astype(jnp.bfloat16)

    # Batch tiling: MXU-aligned tile, >= 2 parallel grid steps for moderate B,
    # padded so every block is full.
    align = _mxu_m_align()
    tb = _choose_tile(B, align)
    bp = _round_up(B, tb)
    xf = jnp.pad(xf, ((0, bp - B), (0, 0)))
    dm = jnp.pad(dm, ((0, bp - B), (0, 0)))

    grid = (bp // tb,)

    act_spec_x = pl.BlockSpec((tb, nz), lambda i: (i, 0))
    act_spec_dm = pl.BlockSpec((tb, 1), lambda i: (i, 0))
    # Weights/biases: full-array blocks, constant index_map -> DMA'd once and
    # kept VMEM-resident across all batch-grid iterations.  (Single-buffering
    # them would free ~1.2 MiB, immaterial given the VMEM headroom, so the
    # portable default buffering is kept.)
    param_specs = [pl.BlockSpec(p.shape, lambda i: (0, 0)) for p in prepared]

    flops = 2 * bp * (nz * NH + 2 * NH * NH + NH * OUT_PAD)
    bytes_accessed = (sum(int(p.size) * p.dtype.itemsize for p in prepared)
                      + bp * (nz * 2 + 4 + OUT_PAD * 4))

    logits = pl.pallas_call(
        _mnist_dis_kernel,
        out_shape=jax.ShapeDtypeStruct((bp, OUT_PAD), jnp.float32),
        grid_spec=pltpu.PrefetchScalarGridSpec(
            num_scalar_prefetch=0,
            grid=grid,
            in_specs=[act_spec_x, act_spec_dm] + param_specs,
            out_specs=pl.BlockSpec((tb, OUT_PAD), lambda i: (i, 0)),
        ),
        compiler_params=pltpu.CompilerParams(
            dimension_semantics=("parallel",),     # shard batch across TCs (v7x)
            vmem_limit_bytes=32 * 1024 * 1024,     # > v5e's 16 MiB default, safe on 64/128 MiB
        ),
        cost_estimate=pl.CostEstimate(
            flops=flops,
            transcendentals=0,
            bytes_accessed=bytes_accessed),
    )(xf, dm, *prepared)

    # Sigmoid only on the single real column of the un-padded rows.
    return jax.nn.sigmoid(logits[:B, :1])


# ---------------------------------------------------------------------------
# References.
# ---------------------------------------------------------------------------
def mnist_dis_reference(x, domain_index, raw_params, domain_num):
    """Pure-f32 JAX mirror of the PyTorch module (eval-mode BN)."""
    B = x.shape[0]
    dm = domain_index.reshape(-1, 1).astype(jnp.float32) / float(domain_num - 1)
    xin = jnp.concatenate([x.reshape(B, -1), jnp.tile(dm, (1, DM_D))], axis=1)

    def block(h, W, c, g, be, m, v):
        y = h @ W.T + c
        y = (y - m) / jnp.sqrt(v + BN_EPS) * g + be
        return jnp.maximum(y, LEAKY_SLOPE * y)

    h = block(xin, *raw_params[0])
    h = block(h, *raw_params[1])
    h = block(h, *raw_params[2])
    Wl, cl = raw_params[3]
    logits = h @ Wl.T + cl
    return 1.0 / (1.0 + jnp.exp(-logits))            # (B, 1)


def mnist_dis_bf16_reference(x, domain_index, prepared, domain_num):
    """Exact math the kernel implements (bf16 matmuls, f32 accumulation)."""
    w1, w1dm, b1, w2, b2, w3, b3, wl, bl = prepared
    B = x.shape[0]
    dm = domain_index.reshape(-1, 1).astype(jnp.float32) / float(domain_num - 1)
    xb = x.reshape(B, -1).astype(jnp.bfloat16)
    h = jnp.dot(xb, w1, preferred_element_type=jnp.float32) + dm * w1dm + b1
    h = jnp.maximum(h, LEAKY_SLOPE * h)
    h = jnp.dot(h.astype(jnp.bfloat16), w2, preferred_element_type=jnp.float32) + b2
    h = jnp.maximum(h, LEAKY_SLOPE * h)
    h = jnp.dot(h.astype(jnp.bfloat16), w3, preferred_element_type=jnp.float32) + b3
    h = jnp.maximum(h, LEAKY_SLOPE * h)
    logits = jnp.dot(h.astype(jnp.bfloat16), wl, preferred_element_type=jnp.float32) + bl
    return jax.nn.sigmoid(logits[:, :1])


# ---------------------------------------------------------------------------
# Deterministic init (PyTorch-style U(-k, k) for conv/linear; non-trivial BN
# stats so the eval-mode BN fold is actually exercised).
# ---------------------------------------------------------------------------
def init_params(key, nz):
    layers = []
    for fan_in in (nz + DM_D, NH, NH):
        key, kw, kb, kg, kbe, km, kv = jax.random.split(key, 7)
        k = 1.0 / math.sqrt(fan_in)
        W = jax.random.uniform(kw, (NH, fan_in), jnp.float32, -k, k)
        c = jax.random.uniform(kb, (NH,), jnp.float32, -k, k)
        gamma = jax.random.uniform(kg, (NH,), jnp.float32, 0.5, 1.5)
        beta = 0.1 * jax.random.normal(kbe, (NH,), jnp.float32)
        mean = 0.1 * jax.random.normal(km, (NH,), jnp.float32)
        var = jax.random.uniform(kv, (NH,), jnp.float32, 0.5, 1.5)
        layers.append((W, c, gamma, beta, mean, var))
    key, kw, kb = jax.random.split(key, 3)
    k = 1.0 / math.sqrt(NH)
    Wl = jax.random.uniform(kw, (1, NH), jnp.float32, -k, k)
    cl = jax.random.uniform(kb, (1,), jnp.float32, -k, k)
    layers.append((Wl, cl))
    return layers


if __name__ == "__main__":
    # Small shapes consistent with the module: opt.nz = 32 latent channels,
    # 1x1 spatial (required by nnSqueeze + Linear(512, 1)), domain_num = 4.
    NZ, H, W = 32, 1, 1
    DOMAIN_NUM = 4

    key = jax.random.PRNGKey(0)
    kp, key = jax.random.split(key)
    raw_params = init_params(kp, NZ)
    prepared = prepare_params(raw_params, nz=NZ)

    # ---- small batch (single grid step, typical GAN-discriminator use) ----
    B = 2
    kx, kd, key = jax.random.split(key, 3)
    x = jax.random.normal(kx, (B, NZ, H, W), jnp.float32)
    domain_index = jax.random.randint(kd, (B, 1), 0, DOMAIN_NUM)

    out = mnist_dis_forward(x, domain_index, prepared, domain_num=DOMAIN_NUM)
    out = jax.block_until_ready(out)
    assert out.shape == (B, 1)

    ref_bf16 = mnist_dis_bf16_reference(x, domain_index, prepared, DOMAIN_NUM)
    ref_f32 = mnist_dis_reference(x, domain_index, raw_params, DOMAIN_NUM)
    assert jnp.allclose(out, ref_bf16, atol=2e-3, rtol=0.0), (
        "kernel vs bf16 reference max|diff|="
        + str(float(jnp.max(jnp.abs(out - ref_bf16)))))
    assert jnp.allclose(out, ref_f32, atol=2e-2, rtol=0.0), (
        "kernel vs f32 module reference max|diff|="
        + str(float(jnp.max(jnp.abs(out - ref_f32)))))

    # ---- moderate batch: exercises the multi-step "parallel" grid path ----
    B2 = 384
    kx2, kd2, key = jax.random.split(key, 3)
    x2 = jax.random.normal(kx2, (B2, NZ, H, W), jnp.float32)
    domain_index2 = jax.random.randint(kd2, (B2, 1), 0, DOMAIN_NUM)

    out2 = mnist_dis_forward(x2, domain_index2, prepared, domain_num=DOMAIN_NUM)
    out2 = jax.block_until_ready(out2)
    assert out2.shape == (B2, 1)
    ref2 = mnist_dis_bf16_reference(x2, domain_index2, prepared, DOMAIN_NUM)
    assert jnp.allclose(out2, ref2, atol=2e-3, rtol=0.0), (
        "batched kernel vs bf16 reference max|diff|="
        + str(float(jnp.max(jnp.abs(out2 - ref2)))))

    print("KERNEL_OK")
</pallas_src>

<mosaic_0001>
module attributes {stable_mosaic.version = 11 : i64} {
  func.func @_mnist_dis_kernel(%arg0: i32, %arg1: memref<16x32xbf16, #tpu.memory_space<vmem>>, %arg2: memref<16x1xf32, #tpu.memory_space<vmem>>, %arg3: memref<32x512xbf16, #tpu.memory_space<vmem>>, %arg4: memref<1x512xf32, #tpu.memory_space<vmem>>, %arg5: memref<1x512xf32, #tpu.memory_space<vmem>>, %arg6: memref<512x512xbf16, #tpu.memory_space<vmem>>, %arg7: memref<1x512xf32, #tpu.memory_space<vmem>>, %arg8: memref<512x512xbf16, #tpu.memory_space<vmem>>, %arg9: memref<1x512xf32, #tpu.memory_space<vmem>>, %arg10: memref<512x128xbf16, #tpu.memory_space<vmem>>, %arg11: memref<1x128xf32, #tpu.memory_space<vmem>>, %arg12: memref<16x128xf32, #tpu.memory_space<vmem>>) attributes {dimension_semantics = [#tpu.dimension_semantics<parallel>], iteration_bounds = array<i64: 1>, scalar_prefetch = 0 : i64, scratch_operands = 0 : i64, tpu.core_type = #tpu.core_type<tc>, window_params = [{transform_indices = @transform_0, window_bounds = array<i64: 16, 32>}, {transform_indices = @transform_1, window_bounds = array<i64: 16, 1>}, {pipeline_mode = #tpu.pipeline_mode<synchronous>, transform_indices = @transform_2, window_bounds = array<i64: 32, 512>}, {pipeline_mode = #tpu.pipeline_mode<synchronous>, transform_indices = @transform_3, window_bounds = array<i64: 1, 512>}, {pipeline_mode = #tpu.pipeline_mode<synchronous>, transform_indices = @transform_4, window_bounds = array<i64: 1, 512>}, {pipeline_mode = #tpu.pipeline_mode<synchronous>, transform_indices = @transform_5, window_bounds = array<i64: 512, 512>}, {pipeline_mode = #tpu.pipeline_mode<synchronous>, transform_indices = @transform_6, window_bounds = array<i64: 1, 512>}, {pipeline_mode = #tpu.pipeline_mode<synchronous>, transform_indices = @transform_7, window_bounds = array<i64: 512, 512>}, {pipeline_mode = #tpu.pipeline_mode<synchronous>, transform_indices = @transform_8, window_bounds = array<i64: 1, 512>}, {pipeline_mode = #tpu.pipeline_mode<synchronous>, transform_indices = @transform_9, window_bounds = array<i64: 512, 128>}, {pipeline_mode = #tpu.pipeline_mode<synchronous>, transform_indices = @transform_10, window_bounds = array<i64: 1, 128>}, {transform_indices = @transform_11, window_bounds = array<i64: 16, 128>}]} {
    %c0 = arith.constant 0 : index
    %c0_0 = arith.constant 0 : index
    %0 = vector.load %arg1[%c0, %c0_0] : memref<16x32xbf16, #tpu.memory_space<vmem>>, vector<16x32xbf16>
    %c0_1 = arith.constant 0 : index
    %c0_2 = arith.constant 0 : index
    %1 = vector.load %arg2[%c0_1, %c0_2] : memref<16x1xf32, #tpu.memory_space<vmem>>, vector<16x1xf32>
    %c0_3 = arith.constant 0 : index
    %c0_4 = arith.constant 0 : index
    %2 = vector.load %arg3[%c0_3, %c0_4] : memref<32x512xbf16, #tpu.memory_space<vmem>>, vector<32x512xbf16>
    %cst = arith.constant dense<0.000000e+00> : vector<16x512xf32>
    %3 = tpu.matmul %0, %2, %cst {dimension_numbers = #tpu.dot_dimension_numbers<[1], [0], [0], [1], [0, 0, 1, 1], [], []>} : vector<16x32xbf16>, vector<32x512xbf16>, vector<16x512xf32> -> vector<16x512xf32>
    %c0_5 = arith.constant 0 : index
    %c0_6 = arith.constant 0 : index
    %4 = vector.load %arg4[%c0_5, %c0_6] : memref<1x512xf32, #tpu.memory_space<vmem>>, vector<1x512xf32>
    %5 = vector.broadcast %1 : vector<16x1xf32> to vector<16x512xf32>
    %6 = vector.broadcast %4 : vector<1x512xf32> to vector<16x512xf32>
    %7 = arith.mulf %5, %6 : vector<16x512xf32>
    %8 = arith.addf %3, %7 : vector<16x512xf32>
    %c0_7 = arith.constant 0 : index
    %c0_8 = arith.constant 0 : index
    %9 = vector.load %arg5[%c0_7, %c0_8] : memref<1x512xf32, #tpu.memory_space<vmem>>, vector<1x512xf32>
    %10 = vector.broadcast %9 : vector<1x512xf32> to vector<16x512xf32>
    %11 = arith.addf %8, %10 : vector<16x512xf32>
    %cst_9 = arith.constant 0.00999999977 : f32
    %12 = vector.broadcast %cst_9 : f32 to vector<16x512xf32>
    %13 = arith.mulf %12, %11 : vector<16x512xf32>
    %14 = arith.maximumf %11, %13 : vector<16x512xf32>
    %15 = arith.truncf %14 : vector<16x512xf32> to vector<16x512xbf16>
    %c0_10 = arith.constant 0 : index
    %c0_11 = arith.constant 0 : index
    %16 = vector.load %arg6[%c0_10, %c0_11] : memref<512x512xbf16, #tpu.memory_space<vmem>>, vector<512x512xbf16>
    %cst_12 = arith.constant dense<0.000000e+00> : vector<16x512xf32>
    %17 = tpu.matmul %15, %16, %cst_12 {dimension_numbers = #tpu.dot_dimension_numbers<[1], [0], [0], [1], [0, 0, 1, 1], [], []>} : vector<16x512xbf16>, vector<512x512xbf16>, vector<16x512xf32> -> vector<16x512xf32>
    %c0_13 = arith.constant 0 : index
    %c0_14 = arith.constant 0 : index
    %18 = vector.load %arg7[%c0_13, %c0_14] : memref<1x512xf32, #tpu.memory_space<vmem>>, vector<1x512xf32>
    %19 = vector.broadcast %18 : vector<1x512xf32> to vector<16x512xf32>
    %20 = arith.addf %17, %19 : vector<16x512xf32>
    %cst_15 = arith.constant 0.00999999977 : f32
    %21 = vector.broadcast %cst_15 : f32 to vector<16x512xf32>
    %22 = arith.mulf %21, %20 : vector<16x512xf32>
    %23 = arith.maximumf %20, %22 : vector<16x512xf32>
    %24 = arith.truncf %23 : vector<16x512xf32> to vector<16x512xbf16>
    %c0_16 = arith.constant 0 : index
    %c0_17 = arith.constant 0 : index
    %25 = vector.load %arg8[%c0_16, %c0_17] : memref<512x512xbf16, #tpu.memory_space<vmem>>, vector<512x512xbf16>
    %cst_18 = arith.constant dense<0.000000e+00> : vector<16x512xf32>
    %26 = tpu.matmul %24, %25, %cst_18 {dimension_numbers = #tpu.dot_dimension_numbers<[1], [0], [0], [1], [0, 0, 1, 1], [], []>} : vector<16x512xbf16>, vector<512x512xbf16>, vector<16x512xf32> -> vector<16x512xf32>
    %c0_19 = arith.constant 0 : index
    %c0_20 = arith.constant 0 : index
    %27 = vector.load %arg9[%c0_19, %c0_20] : memref<1x512xf32, #tpu.memory_space<vmem>>, vector<1x512xf32>
    %28 = vector.broadcast %27 : vector<1x512xf32> to vector<16x512xf32>
    %29 = arith.addf %26, %28 : vector<16x512xf32>
    %cst_21 = arith.constant 0.00999999977 : f32
    %30 = vector.broadcast %cst_21 : f32 to vector<16x512xf32>
    %31 = arith.mulf %30, %29 : vector<16x512xf32>
    %32 = arith.maximumf %29, %31 : vector<16x512xf32>
    %33 = arith.truncf %32 : vector<16x512xf32> to vector<16x512xbf16>
    %c0_22 = arith.constant 0 : index
    %c0_23 = arith.constant 0 : index
    %34 = vector.load %arg10[%c0_22, %c0_23] : memref<512x128xbf16, #tpu.memory_space<vmem>>, vector<512x128xbf16>
    %cst_24 = arith.constant dense<0.000000e+00> : vector<16x128xf32>
    %35 = tpu.matmul %33, %34, %cst_24 {dimension_numbers = #tpu.dot_dimension_numbers<[1], [0], [0], [1], [0, 0, 1, 1], [], []>} : vector<16x512xbf16>, vector<512x128xbf16>, vector<16x128xf32> -> vector<16x128xf32>
    %c0_25 = arith.constant 0 : index
    %c0_26 = arith.constant 0 : index
    %36 = vector.load %arg11[%c0_25, %c0_26] : memref<1x128xf32, #tpu.memory_space<vmem>>, vector<1x128xf32>
    %37 = vector.broadcast %36 : vector<1x128xf32> to vector<16x128xf32>
    %38 = arith.addf %35, %37 : vector<16x128xf32>
    %c0_27 = arith.constant 0 : index
    %c0_28 = arith.constant 0 : index
    %39 = vector.load %arg12[%c0_27, %c0_28] : memref<16x128xf32, #tpu.memory_space<vmem>>, vector<16x128xf32>
    tpu.vector_store %arg12[%c0_27, %c0_28], %38 {strides = array<i32>} : memref<16x128xf32, #tpu.memory_space<vmem>>, vector<16x128xf32>,
    return
  }
  func.func @transform_0(%arg0: i32) -> (i32, i32) {
    %c0_i32 = arith.constant 0 : i32
    %c0_i32_0 = arith.constant 0 : i32
    return %arg0, %c0_i32 : i32, i32
  }
  func.func @transform_1(%arg0: i32) -> (i32, i32) {
    %c0_i32 = arith.constant 0 : i32
    %c0_i32_0 = arith.constant 0 : i32
    return %arg0, %c0_i32 : i32, i32
  }
  func.func @transform_2(%arg0: i32) -> (i32, i32) {
    %c0_i32 = arith.constant 0 : i32
    %c0_i32_0 = arith.constant 0 : i32
    %c0_i32_1 = arith.constant 0 : i32
    return %c0_i32, %c0_i32_0 : i32, i32
  }
  func.func @transform_3(%arg0: i32) -> (i32, i32) {
    %c0_i32 = arith.constant 0 : i32
    %c0_i32_0 = arith.constant 0 : i32
    %c0_i32_1 = arith.constant 0 : i32
    return %c0_i32, %c0_i32_0 : i32, i32
  }
  func.func @transform_4(%arg0: i32) -> (i32, i32) {
    %c0_i32 = arith.constant 0 : i32
    %c0_i32_0 = arith.constant 0 : i32
    %c0_i32_1 = arith.constant 0 : i32
    return %c0_i32, %c0_i32_0 : i32, i32
  }
  func.func @transform_5(%arg0: i32) -> (i32, i32) {
    %c0_i32 = arith.constant 0 : i32
    %c0_i32_0 = arith.constant 0 : i32
    %c0_i32_1 = arith.constant 0 : i32
    return %c0_i32, %c0_i32_0 : i32, i32
  }
  func.func @transform_6(%arg0: i32) -> (i32, i32) {
    %c0_i32 = arith.constant 0 : i32
    %c0_i32_0 = arith.constant 0 : i32
    %c0_i32_1 = arith.constant 0 : i32
    return %c0_i32, %c0_i32_0 : i32, i32
  }
  func.func @transform_7(%arg0: i32) -> (i32, i32) {
    %c0_i32 = arith.constant 0 : i32
    %c0_i32_0 = arith.constant 0 : i32
    %c0_i32_1 = arith.constant 0 : i32
    return %c0_i32, %c0_i32_0 : i32, i32
  }
  func.func @transform_8(%arg0: i32) -> (i32, i32) {
    %c0_i32 = arith.constant 0 : i32
    %c0_i32_0 = arith.constant 0 : i32
    %c0_i32_1 = arith.constant 0 : i32
    return %c0_i32, %c0_i32_0 : i32, i32
  }
  func.func @transform_9(%arg0: i32) -> (i32, i32) {
    %c0_i32 = arith.constant 0 : i32
    %c0_i32_0 = arith.constant 0 : i32
    %c0_i32_1 = arith.constant 0 : i32
    return %c0_i32, %c0_i32_0 : i32, i32
  }
  func.func @transform_10(%arg0: i32) -> (i32, i32) {
    %c0_i32 = arith.constant 0 : i32
    %c0_i32_0 = arith.constant 0 : i32
    %c0_i32_1 = arith.constant 0 : i32
    return %c0_i32, %c0_i32_0 : i32, i32
  }
  func.func @transform_11(%arg0: i32) -> (i32, i32) {
    %c0_i32 = arith.constant 0 : i32
    %c0_i32_0 = arith.constant 0 : i32
    return %arg0, %c0_i32 : i32, i32
  }
}

</mosaic_0001>

<llo_original>
// kernel: mnist_dis_forward.1
$region0: #{mnist_dis_forward.1}
  #allocation0 [shape = 'u32[]', space=smem, size = 0x4, offset = 0x4, fixed_abs, tag = 'smem constant byte address 0x4 - core index']
  #allocation1 [shape = 'u32[144,128]{1,0:T(1,128)}', space=vmem, size = 0x12000, scoped, tag = 'internal scratch']
  %s0 = inlined_call_operand.vmem [shape: bf16[16,32], index: 0, kind: input, shape index: {}]
  %s1 = inlined_call_operand.vmem [shape: f32[16,1], index: 1, kind: input, shape index: {}]
  %s2 = inlined_call_operand.hbm [shape: bf16[32,512], index: 2, kind: input, shape index: {}]
  %s3 = inlined_call_operand.vmem [shape: f32[1,512], index: 3, kind: input, shape index: {}]
  %s4 = inlined_call_operand.vmem [shape: f32[1,512], index: 4, kind: input, shape index: {}]
  %s5 = inlined_call_operand.hbm [shape: bf16[512,512], index: 5, kind: input, shape index: {}]
  %s6 = inlined_call_operand.vmem [shape: f32[1,512], index: 6, kind: input, shape index: {}]
  %s7 = inlined_call_operand.hbm [shape: bf16[512,512], index: 7, kind: input, shape index: {}]
  %s8 = inlined_call_operand.vmem [shape: f32[1,512], index: 8, kind: input, shape index: {}]
  %s9 = inlined_call_operand.hbm [shape: bf16[512,128], index: 9, kind: input, shape index: {}]
  %s10 = inlined_call_operand.vmem [shape: f32[1,128], index: 10, kind: input, shape index: {}]
  %s11 = inlined_call_operand.vmem [shape: f32[16,128], index: 11, kind: output, shape index: {}]
  %s12 = sld [smem:[#allocation0]]
  $region70: #{mnist_dis_forward.1} parent=0
    _
  %s14 = ssub.s32 1, %s12
  %s15 = scalar_select 0, %s14, %s12
  $region1: #{mnist_dis_forward.1} parent=0
    #allocation2 [shape = 'u8[32768]{0}', space=vmem, size = 0x8000, scoped, tag = 'input window, operand 2, single buffered']
    #allocation3 [shape = 's32[1]{0}', space=sflag, size = 0x4, scoped, tag = 'scoped memory for mnist_dis_forward.1']
    #allocation4 [shape = 'u8[524288]{0}', space=vmem, size = 0x80000, scoped, tag = 'input window, operand 5, single buffered']
    #allocation5 [shape = 's32[1]{0}', space=sflag, size = 0x4, scoped, tag = 'scoped memory for mnist_dis_forward.1']
    #allocation6 [shape = 'u8[524288]{0}', space=vmem, size = 0x80000, scoped, tag = 'input window, operand 7, single buffered']
    #allocation7 [shape = 'u8[131072]{0}', space=vmem, size = 0x20000, scoped, tag = 'input window, operand 9, single buffered']
    #allocation8 [shape = 's32[1]{0}', space=sflag, size = 0x4, scoped, tag = 'scoped memory for mnist_dis_forward.1']
    %16 = vsyncpa [#allocation3], 0
    %17 = vsyncpa [#allocation5], 0
    %18 = vsyncpa [#allocation8], 0
    // Predicated region
    $region2: #{mnist_dis_forward.1} parent=1 // pred_check
      _
    $region3: #{mnist_dis_forward.1} parent=1 // pred_check_branch
      %20 = sbr.rel (0) target = $region5
    $region4: #{mnist_dis_forward.1} parent=1 // pred_region
      _
    $region5: #{mnist_dis_forward.1} parent=1 // pred_fallthru
      _
    // Predicated region
    $region6: #{mnist_dis_forward.1} parent=1 // pred_check
      _
    $region7: #{mnist_dis_forward.1} parent=1 // pred_check_branch
      %22 = sbr.rel (0) target = $region9
    $region8: #{mnist_dis_forward.1} parent=1 // pred_region
      _
    $region9: #{mnist_dis_forward.1} parent=1 // pred_fallthru
      _
    // Predicated region
    $region10: #{mnist_dis_forward.1} parent=1 // pred_check
      _
    $region11: #{mnist_dis_forward.1} parent=1 // pred_check_branch
      %24 = sbr.rel (0) target = $region13
    $region12: #{mnist_dis_forward.1} parent=1 // pred_region
      %s26 = ssub.s32 1024, 1024
      %27 = vsyncadd [#allocation3], %s26
      %s28 = sshll.u32 [#allocation2], 4
      %s29 = int_to_ptr.vmem [resolvable:$true] %s28
      %34 = dma.hbm_to_vmem [thread:$0]  %s2, 1024, %s29, [#allocation3], 256, 256, 16
    $region13: #{mnist_dis_forward.1} parent=1 // pred_fallthru
      _
    // Predicated region
    $region14: #{mnist_dis_forward.1} parent=1 // pred_check
      _
    $region15: #{mnist_dis_forward.1} parent=1 // pred_check_branch
      %36 = sbr.rel (0) target = $region17
    $region16: #{mnist_dis_forward.1} parent=1 // pred_region
      _
    $region17: #{mnist_dis_forward.1} parent=1 // pred_fallthru
      _
    // Predicated region
    $region18: #{mnist_dis_forward.1} parent=1 // pred_check
      _
    $region19: #{mnist_dis_forward.1} parent=1 // pred_check_branch
      %38 = sbr.rel (0) target = $region21
    $region20: #{mnist_dis_forward.1} parent=1 // pred_region
      _
    $region21: #{mnist_dis_forward.1} parent=1 // pred_fallthru
      _
    // Predicated region
    $region22: #{mnist_dis_forward.1} parent=1 // pred_check
      _
    $region23: #{mnist_dis_forward.1} parent=1 // pred_check_branch
      %40 = sbr.rel (0) target = $region25
    $region24: #{mnist_dis_forward.1} parent=1 // pred_region
      %s42 = ssub.s32 16384, 16384
      %43 = vsyncadd [#allocation5], %s42
      %s44 = sshll.u32 [#allocation4], 4
      %s45 = int_to_ptr.vmem [resolvable:$true] %s44
      %50 = dma.hbm_to_vmem [thread:$0]  %s5, 16384, %s45, [#allocation5], 256, 256, 16
    $region25: #{mnist_dis_forward.1} parent=1 // pred_fallthru
      _
    // Predicated region
    $region26: #{mnist_dis_forward.1} parent=1 // pred_check
      _
    $region27: #{mnist_dis_forward.1} parent=1 // pred_check_branch
      %52 = sbr.rel (0) target = $region29
    $region28: #{mnist_dis_forward.1} parent=1 // pred_region
      _
    $region29: #{mnist_dis_forward.1} parent=1 // pred_fallthru
      _
    // Predicated region
    $region30: #{mnist_dis_forward.1} parent=1 // pred_check
      _
    $region31: #{mnist_dis_forward.1} parent=1 // pred_check_branch
      %54 = sbr.rel (0) target = $region33
    $region32: #{mnist_dis_forward.1} parent=1 // pred_region
      %s56 = ssub.s32 16384, 16384
      %57 = vsyncadd [#allocation5], %s56
      %s58 = sshll.u32 [#allocation6], 4
      %s59 = int_to_ptr.vmem [resolvable:$true] %s58
      %64 = dma.hbm_to_vmem [thread:$0]  %s7, 16384, %s59, [#allocation5], 256, 256, 16
    $region33: #{mnist_dis_forward.1} parent=1 // pred_fallthru
      _
    // Predicated region
    $region34: #{mnist_dis_forward.1} parent=1 // pred_check
      _
    $region35: #{mnist_dis_forward.1} parent=1 // pred_check_branch
      %66 = sbr.rel (0) target = $region37
    $region36: #{mnist_dis_forward.1} parent=1 // pred_region
      _
    $region37: #{mnist_dis_forward.1} parent=1 // pred_fallthru
      _
    // Predicated region
    $region38: #{mnist_dis_forward.1} parent=1 // pred_check
      _
    $region39: #{mnist_dis_forward.1} parent=1 // pred_check_branch
      %68 = sbr.rel (0) target = $region41
    $region40: #{mnist_dis_forward.1} parent=1 // pred_region
      %s70 = ssub.s32 4096, 4096
      %71 = vsyncadd [#allocation8], %s70
      %s72 = sshll.u32 [#allocation7], 4
      %s73 = int_to_ptr.vmem [resolvable:$true] %s72
      %78 = dma.hbm_to_vmem [thread:$0]  %s9, 4096, %s73, [#allocation8], 64, 64, 4
    $region41: #{mnist_dis_forward.1} parent=1 // pred_fallthru
      _
    // Predicated region
    $region42: #{mnist_dis_forward.1} parent=1 // pred_check
      _
    $region43: #{mnist_dis_forward.1} parent=1 // pred_check_branch
      %80 = sbr.rel (0) target = $region45
    $region44: #{mnist_dis_forward.1} parent=1 // pred_region
      _
    $region45: #{mnist_dis_forward.1} parent=1 // pred_fallthru
      _
    // Predicated region
    $region46: #{mnist_dis_forward.1} parent=1 // pred_check
      _
    $region47: #{mnist_dis_forward.1} parent=1 // pred_check_branch
      %82 = sbr.rel (0) target = $region49
    $region48: #{mnist_dis_forward.1} parent=1 // pred_region
      %83 = dma.done [#allocation3], 1024
    $region49: #{mnist_dis_forward.1} parent=1 // pred_fallthru
      _
    // Predicated region
    $region50: #{mnist_dis_forward.1} parent=1 // pred_check
      _
    $region51: #{mnist_dis_forward.1} parent=1 // pred_check_branch
      %85 = sbr.rel (0) target = $region53
    $region52: #{mnist_dis_forward.1} parent=1 // pred_region
      %86 = dma.done [#allocation5], 16384
    $region53: #{mnist_dis_forward.1} parent=1 // pred_fallthru
      _
    // Predicated region
    $region54: #{mnist_dis_forward.1} parent=1 // pred_check
      _
    $region55: #{mnist_dis_forward.1} parent=1 // pred_check_branch
      %88 = sbr.rel (0) target = $region57
    $region56: #{mnist_dis_forward.1} parent=1 // pred_region
      %89 = dma.done [#allocation5], 16384
    $region57: #{mnist_dis_forward.1} parent=1 // pred_fallthru
      _
    // Predicated region
    $region58: #{mnist_dis_forward.1} parent=1 // pred_check
      _
    $region59: #{mnist_dis_forward.1} parent=1 // pred_check_branch
      %91 = sbr.rel (0) target = $region61
    $region60: #{mnist_dis_forward.1} parent=1 // pred_region
      %92 = dma.done [#allocation8], 4096
    $region61: #{mnist_dis_forward.1} parent=1 // pred_fallthru
      _
    %v94 = vld [vmem:[%s0] sm:$0xf]
    %v95 = vld [vmem:[%s0 + $0x4] sm:$0xf]
    %v96 = vld [vmem:[%s1] sm:$0xff]
    %v97 = vld [vmem:[%s1 + $0x8] sm:$0xff]
    %v98 = vld [vmem:[#allocation2] sm:$0xff]
    %v99 = vld [vmem:[#allocation2 + $0x8] sm:$0xff]
    %v100 = vld [vmem:[#allocation2 + $0x10] sm:$0xff]
    %v101 = vld [vmem:[#allocation2 + $0x18] sm:$0xff]
    %v102 = vld [vmem:[#allocation2 + $0x20] sm:$0xff]
    %v103 = vld [vmem:[#allocation2 + $0x28] sm:$0xff]
    %v104 = vld [vmem:[#allocation2 + $0x30] sm:$0xff]
    %v105 = vld [vmem:[#allocation2 + $0x38] sm:$0xff]
    %v106 = vld [vmem:[%s3] sm:$0xf]
    %108 = vset.pattern.permute.xlu0 0
    %109 = vperm.xlu0 %108, %v96
    %v110 = vpop.permute.xlu0 %109
    %113 = vset.pattern.permute.xlu0 0
    %114 = vperm.xlu0 %113, %v97
    %v115 = vpop.permute.xlu0 %114
    %v118 = vlaneseq
    %v119 = vshrl.u32 %v118, 7
    %v120 = vsub.s32 0, %v119
    %v121 = vrot.slane %v106, %v120
    %v122 = vlaneseq
    %v123 = vshrl.u32 %v122, 7
    %v124 = vsub.s32 1, %v123
    %v125 = vrot.slane %v106, %v124
    %v126 = vlaneseq
    %v127 = vshrl.u32 %v126, 7
    %v128 = vsub.s32 2, %v127
    %v129 = vrot.slane %v106, %v128
    %v130 = vlaneseq
    %v131 = vshrl.u32 %v130, 7
    %v132 = vsub.s32 3, %v131
    %v133 = vrot.slane %v106, %v132
    %v138 = vmul.f32 %v110, %v121
    %v139 = vmul.f32 %v110, %v125
    %v140 = vmul.f32 %v110, %v129
    %v141 = vmul.f32 %v110, %v133
    %v142 = vmul.f32 %v115, %v121
    %v143 = vmul.f32 %v115, %v125
    %v144 = vmul.f32 %v115, %v129
    %v145 = vmul.f32 %v115, %v133
    %v148 = vunpack.c.l.b16 %v94
    %v149 = vunpack.c.l.b16 %v95
    %v150 = vpack.c.b16 %v149, %v148
    %v159 = vunpack.c.l.b16 %v98
    %v160 = vunpack.c.h.b16 %v98
    %v161 = vunpack.c.l.b16 %v99
    %v162 = vunpack.c.h.b16 %v99
    %v163 = vunpack.c.l.b16 %v100
    %v164 = vunpack.c.h.b16 %v100
    %v165 = vunpack.c.l.b16 %v101
    %v166 = vunpack.c.h.b16 %v101
    %v167 = vunpack.c.l.b16 %v102
    %v168 = vunpack.c.h.b16 %v102
    %v169 = vunpack.c.l.b16 %v103
    %v170 = vunpack.c.h.b16 %v103
    %v171 = vunpack.c.l.b16 %v104
    %v172 = vunpack.c.h.b16 %v104
    %v173 = vunpack.c.l.b16 %v105
    %v174 = vunpack.c.h.b16 %v105
    %v175 = vpack.c.b16 %v163, %v159
    %v176 = vpack.c.b16 %v164, %v160
    %v177 = vpack.c.b16 %v165, %v161
    %v178 = vpack.c.b16 %v166, %v162
    %v179 = vpack.c.b16 %v171, %v167
    %v180 = vpack.c.b16 %v172, %v168
    %v181 = vpack.c.b16 %v173, %v169
    %v182 = vpack.c.b16 %v174, %v170
    %vm191 = vcmask 261120
    %v193 = vsel %vm191, %v150, 0
    %195 = vmatprep.subr.bf16.mxu0 %v176
    %196 = vmatpush1.bf16.msra.mxu0 %v175
    %197 = vmatprep.subr.bf16.mxu0 %v180
    %198 = vmatpush1.bf16.msra.mxu0 %v179
    %199 = vmatprep.subr.bf16.mxu0 0
    %200 = vmatpush1.bf16.msra.mxu0 0
    %201 = vmatprep.subr.bf16.mxu0 0
    %202 = vmatpush1.bf16.msra.mxu0 0
    %203 = vmatprep.subr.bf16.mxu0 0
    %204 = vmatpush1.bf16.msra.mxu0 0
    %205 = vmatprep.subr.bf16.mxu0 0
    %206 = vmatpush1.bf16.msra.mxu0 0
    %207 = vmatprep.subr.bf16.mxu0 0
    %208 = vmatpush1.bf16.msra.mxu0 0
    %209 = vmatprep.subr.bf16.mxu0 0
    %210 = vmatpush1.bf16.msra.mxu0 0
    %211 = vmatprep.subr.bf16.mxu0 0
    %212 = vmatpush1.bf16.msra.mxu0 0
    %213 = vmatprep.subr.bf16.mxu0 0
    %214 = vmatpush1.bf16.msra.mxu0 0
    %215 = vmatprep.subr.bf16.mxu0 0
    %216 = vmatpush1.bf16.msra.mxu0 0
    %217 = vmatprep.subr.bf16.mxu0 0
    %218 = vmatpush1.bf16.msra.mxu0 0
    %219 = vmatprep.subr.bf16.mxu0 0
    %220 = vmatpush1.bf16.msra.mxu0 0
    %221 = vmatprep.subr.bf16.mxu0 0
    %222 = vmatpush1.bf16.msra.mxu0 0
    %223 = vmatprep.subr.bf16.mxu0 0
    %224 = vmatpush1.bf16.msra.mxu0 0
    %225 = vmatprep.subr.bf16.mxu0 0
    %226 = vmatpush1.bf16.msra.mxu0 0
    %227 = vmatprep.mubr.bf16.mxu0 0
    %228 = vmatmul.mubr.bf16.gmra.mrb[0].mxu0 %v193
    %v229 = vpop.f32.mrb[0].mxu0
    %v230 = vadd.f32 %v138, %v229
    %v231 = vpop.f32.mrb[0].mxu0
    %v232 = vadd.f32 %v139, %v231
    %v233 = vpop.f32.mrb[0].mxu0
    %v234 = vadd.f32 %v142, %v233
    %v235 = vpop.f32.mrb[0].mxu0
    %v236 = vadd.f32 %v143, %v235
    %237 = vdwg.mxu0
    %238 = vmatprep.subr.bf16.mxu0 %v178
    %239 = vmatpush1.bf16.msra.mxu0 %v177
    %240 = vmatprep.subr.bf16.mxu0 %v182
    %241 = vmatpush1.bf16.msra.mxu0 %v181
    %242 = vmatprep.subr.bf16.mxu0 0
    %243 = vmatpush1.bf16.msra.mxu0 0
    %244 = vmatprep.subr.bf16.mxu0 0
    %245 = vmatpush1.bf16.msra.mxu0 0
    %246 = vmatprep.subr.bf16.mxu0 0
    %247 = vmatpush1.bf16.msra.mxu0 0
    %248 = vmatprep.subr.bf16.mxu0 0
    %249 = vmatpush1.bf16.msra.mxu0 0
    %250 = vmatprep.subr.bf16.mxu0 0
    %251 = vmatpush1.bf16.msra.mxu0 0
    %252 = vmatprep.subr.bf16.mxu0 0
    %253 = vmatpush1.bf16.msra.mxu0 0
    %254 = vmatprep.subr.bf16.mxu0 0
    %255 = vmatpush1.bf16.msra.mxu0 0
    %256 = vmatprep.subr.bf16.mxu0 0
    %257 = vmatpush1.bf16.msra.mxu0 0
    %258 = vmatprep.subr.bf16.mxu0 0
    %259 = vmatpush1.bf16.msra.mxu0 0
    %260 = vmatprep.subr.bf16.mxu0 0
    %261 = vmatpush1.bf16.msra.mxu0 0
    %262 = vmatprep.subr.bf16.mxu0 0
    %263 = vmatpush1.bf16.msra.mxu0 0
    %264 = vmatprep.subr.bf16.mxu0 0
    %265 = vmatpush1.bf16.msra.mxu0 0
    %266 = vmatprep.subr.bf16.mxu0 0
    %267 = vmatpush1.bf16.msra.mxu0 0
    %268 = vmatprep.subr.bf16.mxu0 0
    %269 = vmatpush1.bf16.msra.mxu0 0
    %270 = vmatprep.mubr.bf16.mxu0 0
    %271 = vmatmul.mubr.bf16.gmra.mrb[0].mxu0 %v193
    %v272 = vpop.f32.mrb[0].mxu0
    %v273 = vadd.f32 %v140, %v272
    %v274 = vpop.f32.mrb[0].mxu0
    %v275 = vadd.f32 %v141, %v274
    %v276 = vpop.f32.mrb[0].mxu0
    %v277 = vadd.f32 %v144, %v276
    %v278 = vpop.f32.mrb[0].mxu0
    %v279 = vadd.f32 %v145, %v278
    %280 = vdwg.mxu0
    %v281 = vld [vmem:[%s4] sm:$0xf]
    %v283 = vlaneseq
    %v284 = vshrl.u32 %v283, 7
    %v285 = vsub.s32 0, %v284
    %v286 = vrot.slane %v281, %v285
    %v287 = vlaneseq
    %v288 = vshrl.u32 %v287, 7
    %v289 = vsub.s32 1, %v288
    %v290 = vrot.slane %v281, %v289
    %v291 = vlaneseq
    %v292 = vshrl.u32 %v291, 7
    %v293 = vsub.s32 2, %v292
    %v294 = vrot.slane %v281, %v293
    %v295 = vlaneseq
    %v296 = vshrl.u32 %v295, 7
    %v297 = vsub.s32 3, %v296
    %v298 = vrot.slane %v281, %v297
    %v303 = vadd.f32 %v230, %v286
    %v304 = vadd.f32 %v232, %v290
    %v305 = vadd.f32 %v273, %v294
    %v306 = vadd.f32 %v275, %v298
    %v307 = vadd.f32 %v234, %v286
    %v308 = vadd.f32 %v236, %v290
    %v309 = vadd.f32 %v277, %v294
    %v310 = vadd.f32 %v279, %v298
    %v311 = vmul.f32 %v303, 0.01
    %v312 = vmul.f32 %v304, 0.01
    %v313 = vmul.f32 %v305, 0.01
    %v314 = vmul.f32 %v306, 0.01
    %v315 = vmul.f32 %v307, 0.01
    %v316 = vmul.f32 %v308, 0.01
    %v317 = vmul.f32 %v309, 0.01
    %v318 = vmul.f32 %v310, 0.01
    %v319 = vmax.f32 %v303, %v311
    %v320 = vmax.f32 %v304, %v312
    %v321 = vmax.f32 %v305, %v313
    %v322 = vmax.f32 %v306, %v314
    %v323 = vmax.f32 %v307, %v315
    %v324 = vmax.f32 %v308, %v316
    %v325 = vmax.f32 %v309, %v317
    %v326 = vmax.f32 %v310, %v318
    %v327 = vpack.c.bf16 %v323, %v319
    %v328 = vpack.c.bf16 %v324, %v320
    %v329 = vpack.c.bf16 %v325, %v321
    %v330 = vpack.c.bf16 %v326, %v322
    %v331 = vld [vmem:[#allocation4] sm:$0xff]
    %v332 = vld [vmem:[#allocation4 + $0x8] sm:$0xff]
    %v333 = vld [vmem:[#allocation4 + $0x10] sm:$0xff]
    %v334 = vld [vmem:[#allocation4 + $0x18] sm:$0xff]
    %v335 = vld [vmem:[#allocation4 + $0x20] sm:$0xff]
    %v336 = vld [vmem:[#allocation4 + $0x28] sm:$0xff]
    %v337 = vld [vmem:[#allocation4 + $0x30] sm:$0xff]
    %v338 = vld [vmem:[#allocation4 + $0x38] sm:$0xff]
    %v339 = vld [vmem:[#allocation4 + $0x40] sm:$0xff]
    %v340 = vld [vmem:[#allocation4 + $0x48] sm:$0xff]
    %v341 = vld [vmem:[#allocation4 + $0x50] sm:$0xff]
    %v342 = vld [vmem:[#allocation4 + $0x58] sm:$0xff]
    %v343 = vld [vmem:[#allocation4 + $0x60] sm:$0xff]
    %v344 = vld [vmem:[#allocation4 + $0x68] sm:$0xff]
    %v345 = vld [vmem:[#allocation4 + $0x70] sm:$0xff]
    %v346 = vld [vmem:[#allocation4 + $0x78] sm:$0xff]
    %v347 = vld [vmem:[#allocation4 + $0x80] sm:$0xff]
    %v348 = vld [vmem:[#allocation4 + $0x88] sm:$0xff]
    %v349 = vld [vmem:[#allocation4 + $0x90] sm:$0xff]
    %v350 = vld [vmem:[#allocation4 + $0x98] sm:$0xff]
    %v351 = vld [vmem:[#allocation4 + $0xa0] sm:$0xff]
    %v352 = vld [vmem:[#allocation4 + $0xa8] sm:$0xff]
    %v353 = vld [vmem:[#allocation4 + $0xb0] sm:$0xff]
    %v354 = vld [vmem:[#allocation4 + $0xb8] sm:$0xff]
    %v355 = vld [vmem:[#allocation4 + $0xc0] sm:$0xff]
    %v356 = vld [vmem:[#allocation4 + $0xc8] sm:$0xff]
    %v357 = vld [vmem:[#allocation4 + $0xd0] sm:$0xff]
    %v358 = vld [vmem:[#allocation4 + $0xd8] sm:$0xff]
    %v359 = vld [vmem:[#allocation4 + $0xe0] sm:$0xff]
    %v360 = vld [vmem:[#allocation4 + $0xe8] sm:$0xff]
    %v361 = vld [vmem:[#allocation4 + $0xf0] sm:$0xff]
    %v362 = vld [vmem:[#allocation4 + $0xf8] sm:$0xff]
    %v363 = vld [vmem:[#allocation4 + $0x100] sm:$0xff]
    %v364 = vld [vmem:[#allocation4 + $0x108] sm:$0xff]
    %v365 = vld [vmem:[#allocation4 + $0x110] sm:$0xff]
    %v366 = vld [vmem:[#allocation4 + $0x118] sm:$0xff]
    %v367 = vld [vmem:[#allocation4 + $0x120] sm:$0xff]
    %v368 = vld [vmem:[#allocation4 + $0x128] sm:$0xff]
    %v369 = vld [vmem:[#allocation4 + $0x130] sm:$0xff]
    %v370 = vld [vmem:[#allocation4 + $0x138] sm:$0xff]
    %v371 = vld [vmem:[#allocation4 + $0x140] sm:$0xff]
    %v372 = vld [vmem:[#allocation4 + $0x148] sm:$0xff]
    %v373 = vld [vmem:[#allocation4 + $0x150] sm:$0xff]
    %v374 = vld [vmem:[#allocation4 + $0x158] sm:$0xff]
    %v375 = vld [vmem:[#allocation4 + $0x160] sm:$0xff]
    %v376 = vld [vmem:[#allocation4 + $0x168] sm:$0xff]
    %v377 = vld [vmem:[#allocation4 + $0x170] sm:$0xff]
    %v378 = vld [vmem:[#allocation4 + $0x178] sm:$0xff]
    %v379 = vld [vmem:[#allocation4 + $0x180] sm:$0xff]
    %v380 = vld [vmem:[#allocation4 + $0x188] sm:$0xff]
    %v381 = vld [vmem:[#allocation4 + $0x190] sm:$0xff]
    %v382 = vld [vmem:[#allocation4 + $0x198] sm:$0xff]
    %v383 = vld [vmem:[#allocation4 + $0x1a0] sm:$0xff]
    %v384 = vld [vmem:[#allocation4 + $0x1a8] sm:$0xff]
    %v385 = vld [vmem:[#allocation4 + $0x1b0] sm:$0xff]
    %v386 = vld [vmem:[#allocation4 + $0x1b8] sm:$0xff]
    %v387 = vld [vmem:[#allocation4 + $0x1c0] sm:$0xff]
    %v388 = vld [vmem:[#allocation4 + $0x1c8] sm:$0xff]
    %v389 = vld [vmem:[#allocation4 + $0x1d0] sm:$0xff]
    %v390 = vld [vmem:[#allocation4 + $0x1d8] sm:$0xff]
    %v391 = vld [vmem:[#allocation4 + $0x1e0] sm:$0xff]
    %v392 = vld [vmem:[#allocation4 + $0x1e8] sm:$0xff]
    %v393 = vld [vmem:[#allocation4 + $0x1f0] sm:$0xff]
    %v394 = vld [vmem:[#allocation4 + $0x1f8] sm:$0xff]
    %v395 = vld [vmem:[#allocation4 + $0x200] sm:$0xff]
    %v396 = vld [vmem:[#allocation4 + $0x208] sm:$0xff]
    %v397 = vld [vmem:[#allocation4 + $0x210] sm:$0xff]
    %v398 = vld [vmem:[#allocation4 + $0x218] sm:$0xff]
    %v399 = vld [vmem:[#allocation4 + $0x220] sm:$0xff]
    %v400 = vld [vmem:[#allocation4 + $0x228] sm:$0xff]
    %v401 = vld [vmem:[#allocation4 + $0x230] sm:$0xff]
    %v402 = vld [vmem:[#allocation4 + $0x238] sm:$0xff]
    %v403 = vld [vmem:[#allocation4 + $0x240] sm:$0xff]
    %v404 = vld [vmem:[#allocation4 + $0x248] sm:$0xff]
    %v405 = vld [vmem:[#allocation4 + $0x250] sm:$0xff]
    %v406 = vld [vmem:[#allocation4 + $0x258] sm:$0xff]
    %v407 = vld [vmem:[#allocation4 + $0x260] sm:$0xff]
    %v408 = vld [vmem:[#allocation4 + $0x268] sm:$0xff]
    %v409 = vld [vmem:[#allocation4 + $0x270] sm:$0xff]
    %v410 = vld [vmem:[#allocation4 + $0x278] sm:$0xff]
    %v411 = vld [vmem:[#allocation4 + $0x280] sm:$0xff]
    %v412 = vld [vmem:[#allocation4 + $0x288] sm:$0xff]
    %v413 = vld [vmem:[#allocation4 + $0x290] sm:$0xff]
    %v414 = vld [vmem:[#allocation4 + $0x298] sm:$0xff]
    %v415 = vld [vmem:[#allocation4 + $0x2a0] sm:$0xff]
    %v416 = vld [vmem:[#allocation4 + $0x2a8] sm:$0xff]
    %v417 = vld [vmem:[#allocation4 + $0x2b0] sm:$0xff]
    %v418 = vld [vmem:[#allocation4 + $0x2b8] sm:$0xff]
    %v419 = vld [vmem:[#allocation4 + $0x2c0] sm:$0xff]
    %v420 = vld [vmem:[#allocation4 + $0x2c8] sm:$0xff]
    %v421 = vld [vmem:[#allocation4 + $0x2d0] sm:$0xff]
    %v422 = vld [vmem:[#allocation4 + $0x2d8] sm:$0xff]
    %v423 = vld [vmem:[#allocation4 + $0x2e0] sm:$0xff]
    %v424 = vld [vmem:[#allocation4 + $0x2e8] sm:$0xff]
    %v425 = vld [vmem:[#allocation4 + $0x2f0] sm:$0xff]
    %v426 = vld [vmem:[#allocation4 + $0x2f8] sm:$0xff]
    %v427 = vld [vmem:[#allocation4 + $0x300] sm:$0xff]
    %v428 = vld [vmem:[#allocation4 + $0x308] sm:$0xff]
    %v429 = vld [vmem:[#allocation4 + $0x310] sm:$0xff]
    %v430 = vld [vmem:[#allocation4 + $0x318] sm:$0xff]
    %v431 = vld [vmem:[#allocation4 + $0x320] sm:$0xff]
    %v432 = vld [vmem:[#allocation4 + $0x328] sm:$0xff]
    %v433 = vld [vmem:[#allocation4 + $0x330] sm:$0xff]
    %v434 = vld [vmem:[#allocation4 + $0x338] sm:$0xff]
    %v435 = vld [vmem:[#allocation4 + $0x340] sm:$0xff]
    %v436 = vld [vmem:[#allocation4 + $0x348] sm:$0xff]
    %v437 = vld [vmem:[#allocation4 + $0x350] sm:$0xff]
    %v438 = vld [vmem:[#allocation4 + $0x358] sm:$0xff]
    %v439 = vld [vmem:[#allocation4 + $0x360] sm:$0xff]
    %v440 = vld [vmem:[#allocation4 + $0x368] sm:$0xff]
    %v441 = vld [vmem:[#allocation4 + $0x370] sm:$0xff]
    %v442 = vld [vmem:[#allocation4 + $0x378] sm:$0xff]
    %v443 = vld [vmem:[#allocation4 + $0x380] sm:$0xff]
    %v444 = vld [vmem:[#allocation4 + $0x388] sm:$0xff]
    %v445 = vld [vmem:[#allocation4 + $0x390] sm:$0xff]
    %v446 = vld [vmem:[#allocation4 + $0x398] sm:$0xff]
    %v447 = vld [vmem:[#allocation4 + $0x3a0] sm:$0xff]
    %v448 = vld [vmem:[#allocation4 + $0x3a8] sm:$0xff]
    %v449 = vld [vmem:[#allocation4 + $0x3b0] sm:$0xff]
    %v450 = vld [vmem:[#allocation4 + $0x3b8] sm:$0xff]
    %v451 = vld [vmem:[#allocation4 + $0x3c0] sm:$0xff]
    %v452 = vld [vmem:[#allocation4 + $0x3c8] sm:$0xff]
    %v453 = vld [vmem:[#allocation4 + $0x3d0] sm:$0xff]
    %v454 = vld [vmem:[#allocation4 + $0x3d8] sm:$0xff]
    %v455 = vld [vmem:[#allocation4 + $0x3e0] sm:$0xff]
    %v456 = vld [vmem:[#allocation4 + $0x3e8] sm:$0xff]
    %v457 = vld [vmem:[#allocation4 + $0x3f0] sm:$0xff]
    %v458 = vld [vmem:[#allocation4 + $0x3f8] sm:$0xff]
    %v459 = vld [vmem:[%s6] sm:$0xf]
    %v461 = vlaneseq
    %v462 = vshrl.u32 %v461, 7
    %v463 = vsub.s32 0, %v462
    %v464 = vrot.slane %v459, %v463
    %v465 = vlaneseq
    %v466 = vshrl.u32 %v465, 7
    %v467 = vsub.s32 1, %v466
    %v468 = vrot.slane %v459, %v467
    %v469 = vlaneseq
    %v470 = vshrl.u32 %v469, 7
    %v471 = vsub.s32 2, %v470
    %v472 = vrot.slane %v459, %v471
    %v473 = vlaneseq
    %v474 = vshrl.u32 %v473, 7
    %v475 = vsub.s32 3, %v474
    %v476 = vrot.slane %v459, %v475
    %v609 = vunpack.c.l.b16 %v331
    %v610 = vunpack.c.h.b16 %v331
    %v611 = vunpack.c.l.b16 %v332
    %v612 = vunpack.c.h.b16 %v332
    %v613 = vunpack.c.l.b16 %v333
    %v614 = vunpack.c.h.b16 %v333
    %v615 = vunpack.c.l.b16 %v334
    %v616 = vunpack.c.h.b16 %v334
    %v617 = vunpack.c.l.b16 %v335
    %v618 = vunpack.c.h.b16 %v335
    %v619 = vunpack.c.l.b16 %v336
    %v620 = vunpack.c.h.b16 %v336
    %v621 = vunpack.c.l.b16 %v337
    %v622 = vunpack.c.h.b16 %v337
    %v623 = vunpack.c.l.b16 %v338
    %v624 = vunpack.c.h.b16 %v338
    %v625 = vunpack.c.l.b16 %v339
    %v626 = vunpack.c.h.b16 %v339
    %v627 = vunpack.c.l.b16 %v340
    %v628 = vunpack.c.h.b16 %v340
    %v629 = vunpack.c.l.b16 %v341
    %v630 = vunpack.c.h.b16 %v341
    %v631 = vunpack.c.l.b16 %v342
    %v632 = vunpack.c.h.b16 %v342
    %v633 = vunpack.c.l.b16 %v343
    %v634 = vunpack.c.h.b16 %v343
    %v635 = vunpack.c.l.b16 %v344
    %v636 = vunpack.c.h.b16 %v344
    %v637 = vunpack.c.l.b16 %v345
    %v638 = vunpack.c.h.b16 %v345
    %v639 = vunpack.c.l.b16 %v346
    %v640 = vunpack.c.h.b16 %v346
    %v641 = vunpack.c.l.b16 %v347
    %v642 = vunpack.c.h.b16 %v347
    %v643 = vunpack.c.l.b16 %v348
    %v644 = vunpack.c.h.b16 %v348
    %v645 = vunpack.c.l.b16 %v349
    %v646 = vunpack.c.h.b16 %v349
    %v647 = vunpack.c.l.b16 %v350
    %v648 = vunpack.c.h.b16 %v350
    %v649 = vunpack.c.l.b16 %v351
    %v650 = vunpack.c.h.b16 %v351
    %v651 = vunpack.c.l.b16 %v352
    %v652 = vunpack.c.h.b16 %v352
    %v653 = vunpack.c.l.b16 %v353
    %v654 = vunpack.c.h.b16 %v353
    %v655 = vunpack.c.l.b16 %v354
    %v656 = vunpack.c.h.b16 %v354
    %v657 = vunpack.c.l.b16 %v355
    %v658 = vunpack.c.h.b16 %v355
    %v659 = vunpack.c.l.b16 %v356
    %v660 = vunpack.c.h.b16 %v356
    %v661 = vunpack.c.l.b16 %v357
    %v662 = vunpack.c.h.b16 %v357
    %v663 = vunpack.c.l.b16 %v358
    %v664 = vunpack.c.h.b16 %v358
    %v665 = vunpack.c.l.b16 %v359
    %v666 = vunpack.c.h.b16 %v359
    %v667 = vunpack.c.l.b16 %v360
    %v668 = vunpack.c.h.b16 %v360
    %v669 = vunpack.c.l.b16 %v361
    %v670 = vunpack.c.h.b16 %v361
    %v671 = vunpack.c.l.b16 %v362
    %v672 = vunpack.c.h.b16 %v362
    %v673 = vunpack.c.l.b16 %v363
    %v674 = vunpack.c.h.b16 %v363
    %v675 = vunpack.c.l.b16 %v364
    %v676 = vunpack.c.h.b16 %v364
    %v677 = vunpack.c.l.b16 %v365
    %v678 = vunpack.c.h.b16 %v365
    %v679 = vunpack.c.l.b16 %v366
    %v680 = vunpack.c.h.b16 %v366
    %v681 = vunpack.c.l.b16 %v367
    %v682 = vunpack.c.h.b16 %v367
    %v683 = vunpack.c.l.b16 %v368
    %v684 = vunpack.c.h.b16 %v368
    %v685 = vunpack.c.l.b16 %v369
    %v686 = vunpack.c.h.b16 %v369
    %v687 = vunpack.c.l.b16 %v370
    %v688 = vunpack.c.h.b16 %v370
    %v689 = vunpack.c.l.b16 %v371
    %v690 = vunpack.c.h.b16 %v371
    %v691 = vunpack.c.l.b16 %v372
    %v692 = vunpack.c.h.b16 %v372
    %v693 = vunpack.c.l.b16 %v373
    %v694 = vunpack.c.h.b16 %v373
    %v695 = vunpack.c.l.b16 %v374
    %v696 = vunpack.c.h.b16 %v374
    %v697 = vunpack.c.l.b16 %v375
    %v698 = vunpack.c.h.b16 %v375
    %v699 = vunpack.c.l.b16 %v376
    %v700 = vunpack.c.h.b16 %v376
    %v701 = vunpack.c.l.b16 %v377
    %v702 = vunpack.c.h.b16 %v377
    %v703 = vunpack.c.l.b16 %v378
    %v704 = vunpack.c.h.b16 %v378
    %v705 = vunpack.c.l.b16 %v379
    %v706 = vunpack.c.h.b16 %v379
    %v707 = vunpack.c.l.b16 %v380
    %v708 = vunpack.c.h.b16 %v380
    %v709 = vunpack.c.l.b16 %v381
    %v710 = vunpack.c.h.b16 %v381
    %v711 = vunpack.c.l.b16 %v382
    %v712 = vunpack.c.h.b16 %v382
    %v713 = vunpack.c.l.b16 %v383
    %v714 = vunpack.c.h.b16 %v383
    %v715 = vunpack.c.l.b16 %v384
    %v716 = vunpack.c.h.b16 %v384
    %v717 = vunpack.c.l.b16 %v385
    %v718 = vunpack.c.h.b16 %v385
    %v719 = vunpack.c.l.b16 %v386
    %v720 = vunpack.c.h.b16 %v386
    %v721 = vunpack.c.l.b16 %v387
    %v722 = vunpack.c.h.b16 %v387
    %v723 = vunpack.c.l.b16 %v388
    %v724 = vunpack.c.h.b16 %v388
    %v725 = vunpack.c.l.b16 %v389
    %v726 = vunpack.c.h.b16 %v389
    %v727 = vunpack.c.l.b16 %v390
    %v728 = vunpack.c.h.b16 %v390
    %v729 = vunpack.c.l.b16 %v391
    %v730 = vunpack.c.h.b16 %v391
    %v731 = vunpack.c.l.b16 %v392
    %v732 = vunpack.c.h.b16 %v392
    %v733 = vunpack.c.l.b16 %v393
    %v734 = vunpack.c.h.b16 %v393
    %v735 = vunpack.c.l.b16 %v394
    %v736 = vunpack.c.h.b16 %v394
    %v737 = vunpack.c.l.b16 %v395
    %v738 = vunpack.c.h.b16 %v395
    %v739 = vunpack.c.l.b16 %v396
    %v740 = vunpack.c.h.b16 %v396
    %v741 = vunpack.c.l.b16 %v397
    %v742 = vunpack.c.h.b16 %v397
    %v743 = vunpack.c.l.b16 %v398
    %v744 = vunpack.c.h.b16 %v398
    %v745 = vunpack.c.l.b16 %v399
    %v746 = vunpack.c.h.b16 %v399
    %v747 = vunpack.c.l.b16 %v400
    %v748 = vunpack.c.h.b16 %v400
    %v749 = vunpack.c.l.b16 %v401
    %v750 = vunpack.c.h.b16 %v401
    %v751 = vunpack.c.l.b16 %v402
    %v752 = vunpack.c.h.b16 %v402
    %v753 = vunpack.c.l.b16 %v403
    %v754 = vunpack.c.h.b16 %v403
    %v755 = vunpack.c.l.b16 %v404
    %v756 = vunpack.c.h.b16 %v404
    %v757 = vunpack.c.l.b16 %v405
    %v758 = vunpack.c.h.b16 %v405
    %v759 = vunpack.c.l.b16 %v406
    %v760 = vunpack.c.h.b16 %v406
    %v761 = vunpack.c.l.b16 %v407
    %v762 = vunpack.c.h.b16 %v407
    %v763 = vunpack.c.l.b16 %v408
    %v764 = vunpack.c.h.b16 %v408
    %v765 = vunpack.c.l.b16 %v409
    %v766 = vunpack.c.h.b16 %v409
    %v767 = vunpack.c.l.b16 %v410
    %v768 = vunpack.c.h.b16 %v410
    %v769 = vunpack.c.l.b16 %v411
    %v770 = vunpack.c.h.b16 %v411
    %v771 = vunpack.c.l.b16 %v412
    %v772 = vunpack.c.h.b16 %v412
    %v773 = vunpack.c.l.b16 %v413
    %v774 = vunpack.c.h.b16 %v413
    %v775 = vunpack.c.l.b16 %v414
    %v776 = vunpack.c.h.b16 %v414
    %v777 = vunpack.c.l.b16 %v415
    %v778 = vunpack.c.h.b16 %v415
    %v779 = vunpack.c.l.b16 %v416
    %v780 = vunpack.c.h.b16 %v416
    %v781 = vunpack.c.l.b16 %v417
    %v782 = vunpack.c.h.b16 %v417
    %v783 = vunpack.c.l.b16 %v418
    %v784 = vunpack.c.h.b16 %v418
    %v785 = vunpack.c.l.b16 %v419
    %v786 = vunpack.c.h.b16 %v419
    %v787 = vunpack.c.l.b16 %v420
    %v788 = vunpack.c.h.b16 %v420
    %v789 = vunpack.c.l.b16 %v421
    %v790 = vunpack.c.h.b16 %v421
    %v791 = vunpack.c.l.b16 %v422
    %v792 = vunpack.c.h.b16 %v422
    %v793 = vunpack.c.l.b16 %v423
    %v794 = vunpack.c.h.b16 %v423
    %v795 = vunpack.c.l.b16 %v424
    %v796 = vunpack.c.h.b16 %v424
    %v797 = vunpack.c.l.b16 %v425
    %v798 = vunpack.c.h.b16 %v425
    %v799 = vunpack.c.l.b16 %v426
    %v800 = vunpack.c.h.b16 %v426
    %v801 = vunpack.c.l.b16 %v427
    %v802 = vunpack.c.h.b16 %v427
    %v803 = vunpack.c.l.b16 %v428
    %v804 = vunpack.c.h.b16 %v428
    %v805 = vunpack.c.l.b16 %v429
    %v806 = vunpack.c.h.b16 %v429
    %v807 = vunpack.c.l.b16 %v430
    %v808 = vunpack.c.h.b16 %v430
    %v809 = vunpack.c.l.b16 %v431
    %v810 = vunpack.c.h.b16 %v431
    %v811 = vunpack.c.l.b16 %v432
    %v812 = vunpack.c.h.b16 %v432
    %v813 = vunpack.c.l.b16 %v433
    %v814 = vunpack.c.h.b16 %v433
    %v815 = vunpack.c.l.b16 %v434
    %v816 = vunpack.c.h.b16 %v434
    %v817 = vunpack.c.l.b16 %v435
    %v818 = vunpack.c.h.b16 %v435
    %v819 = vunpack.c.l.b16 %v436
    %v820 = vunpack.c.h.b16 %v436
    %v821 = vunpack.c.l.b16 %v437
    %v822 = vunpack.c.h.b16 %v437
    %v823 = vunpack.c.l.b16 %v438
    %v824 = vunpack.c.h.b16 %v438
    %v825 = vunpack.c.l.b16 %v439
    %v826 = vunpack.c.h.b16 %v439
    %v827 = vunpack.c.l.b16 %v440
    %v828 = vunpack.c.h.b16 %v440
    %v829 = vunpack.c.l.b16 %v441
    %v830 = vunpack.c.h.b16 %v441
    %v831 = vunpack.c.l.b16 %v442
    %v832 = vunpack.c.h.b16 %v442
    %v833 = vunpack.c.l.b16 %v443
    %v834 = vunpack.c.h.b16 %v443
    %v835 = vunpack.c.l.b16 %v444
    %v836 = vunpack.c.h.b16 %v444
    %v837 = vunpack.c.l.b16 %v445
    %v838 = vunpack.c.h.b16 %v445
    %v839 = vunpack.c.l.b16 %v446
    %v840 = vunpack.c.h.b16 %v446
    %v841 = vunpack.c.l.b16 %v447
    %v842 = vunpack.c.h.b16 %v447
    %v843 = vunpack.c.l.b16 %v448
    %v844 = vunpack.c.h.b16 %v448
    %v845 = vunpack.c.l.b16 %v449
    %v846 = vunpack.c.h.b16 %v449
    %v847 = vunpack.c.l.b16 %v450
    %v848 = vunpack.c.h.b16 %v450
    %v849 = vunpack.c.l.b16 %v451
    %v850 = vunpack.c.h.b16 %v451
    %v851 = vunpack.c.l.b16 %v452
    %v852 = vunpack.c.h.b16 %v452
    %v853 = vunpack.c.l.b16 %v453
    %v854 = vunpack.c.h.b16 %v453
    %v855 = vunpack.c.l.b16 %v454
    %v856 = vunpack.c.h.b16 %v454
    %v857 = vunpack.c.l.b16 %v455
    %v858 = vunpack.c.h.b16 %v455
    %v859 = vunpack.c.l.b16 %v456
    %v860 = vunpack.c.h.b16 %v456
    %v861 = vunpack.c.l.b16 %v457
    %v862 = vunpack.c.h.b16 %v457
    %v863 = vunpack.c.l.b16 %v458
    %v864 = vunpack.c.h.b16 %v458
    %v865 = vpack.c.b16 %v613, %v609
    %v866 = vpack.c.b16 %v614, %v610
    %v867 = vpack.c.b16 %v615, %v611
    %v868 = vpack.c.b16 %v616, %v612
    %v869 = vpack.c.b16 %v621, %v617
    %v870 = vpack.c.b16 %v622, %v618
    %v871 = vpack.c.b16 %v623, %v619
    %v872 = vpack.c.b16 %v624, %v620
    %v873 = vpack.c.b16 %v629, %v625
    %v874 = vpack.c.b16 %v630, %v626
    %v875 = vpack.c.b16 %v631, %v627
    %v876 = vpack.c.b16 %v632, %v628
    %v877 = vpack.c.b16 %v637, %v633
    %v878 = vpack.c.b16 %v638, %v634
    %v879 = vpack.c.b16 %v639, %v635
    %v880 = vpack.c.b16 %v640, %v636
    %v881 = vpack.c.b16 %v645, %v641
    %v882 = vpack.c.b16 %v646, %v642
    %v883 = vpack.c.b16 %v647, %v643
    %v884 = vpack.c.b16 %v648, %v644
    %v885 = vpack.c.b16 %v653, %v649
    %v886 = vpack.c.b16 %v654, %v650
    %v887 = vpack.c.b16 %v655, %v651
    %v888 = vpack.c.b16 %v656, %v652
    %v889 = vpack.c.b16 %v661, %v657
    %v890 = vpack.c.b16 %v662, %v658
    %v891 = vpack.c.b16 %v663, %v659
    %v892 = vpack.c.b16 %v664, %v660
    %v893 = vpack.c.b16 %v669, %v665
    %v894 = vpack.c.b16 %v670, %v666
    %v895 = vpack.c.b16 %v671, %v667
    %v896 = vpack.c.b16 %v672, %v668
    %v897 = vpack.c.b16 %v677, %v673
    %v898 = vpack.c.b16 %v678, %v674
    %v899 = vpack.c.b16 %v679, %v675
    %v900 = vpack.c.b16 %v680, %v676
    %v901 = vpack.c.b16 %v685, %v681
    %v902 = vpack.c.b16 %v686, %v682
    %v903 = vpack.c.b16 %v687, %v683
    %v904 = vpack.c.b16 %v688, %v684
    %v905 = vpack.c.b16 %v693, %v689
    %v906 = vpack.c.b16 %v694, %v690
    %v907 = vpack.c.b16 %v695, %v691
    %v908 = vpack.c.b16 %v696, %v692
    %v909 = vpack.c.b16 %v701, %v697
    %v910 = vpack.c.b16 %v702, %v698
    %v911 = vpack.c.b16 %v703, %v699
    %v912 = vpack.c.b16 %v704, %v700
    %v913 = vpack.c.b16 %v709, %v705
    %v914 = vpack.c.b16 %v710, %v706
    %v915 = vpack.c.b16 %v711, %v707
    %v916 = vpack.c.b16 %v712, %v708
    %v917 = vpack.c.b16 %v717, %v713
    %v918 = vpack.c.b16 %v718, %v714
    %v919 = vpack.c.b16 %v719, %v715
    %v920 = vpack.c.b16 %v720, %v716
    %v921 = vpack.c.b16 %v725, %v721
    %v922 = vpack.c.b16 %v726, %v722
    %v923 = vpack.c.b16 %v727, %v723
    %v924 = vpack.c.b16 %v728, %v724
    %v925 = vpack.c.b16 %v733, %v729
    %v926 = vpack.c.b16 %v734, %v730
    %v927 = vpack.c.b16 %v735, %v731
    %v928 = vpack.c.b16 %v736, %v732
    %v929 = vpack.c.b16 %v741, %v737
    %v930 = vpack.c.b16 %v742, %v738
    %v931 = vpack.c.b16 %v743, %v739
    %v932 = vpack.c.b16 %v744, %v740
    %v933 = vpack.c.b16 %v749, %v745
    %v934 = vpack.c.b16 %v750, %v746
    %v935 = vpack.c.b16 %v751, %v747
    %v936 = vpack.c.b16 %v752, %v748
    %v937 = vpack.c.b16 %v757, %v753
    %v938 = vpack.c.b16 %v758, %v754
    %v939 = vpack.c.b16 %v759, %v755
    %v940 = vpack.c.b16 %v760, %v756
    %v941 = vpack.c.b16 %v765, %v761
    %v942 = vpack.c.b16 %v766, %v762
    %v943 = vpack.c.b16 %v767, %v763
    %v944 = vpack.c.b16 %v768, %v764
    %v945 = vpack.c.b16 %v773, %v769
    %v946 = vpack.c.b16 %v774, %v770
    %v947 = vpack.c.b16 %v775, %v771
    %v948 = vpack.c.b16 %v776, %v772
    %v949 = vpack.c.b16 %v781, %v777
    %v950 = vpack.c.b16 %v782, %v778
    %v951 = vpack.c.b16 %v783, %v779
    %v952 = vpack.c.b16 %v784, %v780
    %v953 = vpack.c.b16 %v789, %v785
    %v954 = vpack.c.b16 %v790, %v786
    %v955 = vpack.c.b16 %v791, %v787
    %v956 = vpack.c.b16 %v792, %v788
    %v957 = vpack.c.b16 %v797, %v793
    %v958 = vpack.c.b16 %v798, %v794
    %v959 = vpack.c.b16 %v799, %v795
    %v960 = vpack.c.b16 %v800, %v796
    %v961 = vpack.c.b16 %v805, %v801
    %v962 = vpack.c.b16 %v806, %v802
    %v963 = vpack.c.b16 %v807, %v803
    %v964 = vpack.c.b16 %v808, %v804
    %v965 = vpack.c.b16 %v813, %v809
    %v966 = vpack.c.b16 %v814, %v810
    %v967 = vpack.c.b16 %v815, %v811
    %v968 = vpack.c.b16 %v816, %v812
    %v969 = vpack.c.b16 %v821, %v817
    %v970 = vpack.c.b16 %v822, %v818
    %v971 = vpack.c.b16 %v823, %v819
    %v972 = vpack.c.b16 %v824, %v820
    %v973 = vpack.c.b16 %v829, %v825
    %v974 = vpack.c.b16 %v830, %v826
    %v975 = vpack.c.b16 %v831, %v827
    %v976 = vpack.c.b16 %v832, %v828
    %v977 = vpack.c.b16 %v837, %v833
    %v978 = vpack.c.b16 %v838, %v834
    %v979 = vpack.c.b16 %v839, %v835
    %v980 = vpack.c.b16 %v840, %v836
    %v981 = vpack.c.b16 %v845, %v841
    %v982 = vpack.c.b16 %v846, %v842
    %v983 = vpack.c.b16 %v847, %v843
    %v984 = vpack.c.b16 %v848, %v844
    %v985 = vpack.c.b16 %v853, %v849
    %v986 = vpack.c.b16 %v854, %v850
    %v987 = vpack.c.b16 %v855, %v851
    %v988 = vpack.c.b16 %v856, %v852
    %v989 = vpack.c.b16 %v861, %v857
    %v990 = vpack.c.b16 %v862, %v858
    %v991 = vpack.c.b16 %v863, %v859
    %v992 = vpack.c.b16 %v864, %v860
    %1121 = vmatprep.subr.bf16.mxu0 %v866
    %1122 = vmatpush1.bf16.msra.mxu0 %v865
    %1123 = vmatprep.subr.bf16.mxu0 %v870
    %1124 = vmatpush1.bf16.msra.mxu0 %v869
    %1125 = vmatprep.subr.bf16.mxu0 %v874
    %1126 = vmatpush1.bf16.msra.mxu0 %v873
    %1127 = vmatprep.subr.bf16.mxu0 %v878
    %1128 = vmatpush1.bf16.msra.mxu0 %v877
    %1129 = vmatprep.subr.bf16.mxu0 %v882
    %1130 = vmatpush1.bf16.msra.mxu0 %v881
    %1131 = vmatprep.subr.bf16.mxu0 %v886
    %1132 = vmatpush1.bf16.msra.mxu0 %v885
    %1133 = vmatprep.subr.bf16.mxu0 %v890
    %1134 = vmatpush1.bf16.msra.mxu0 %v889
    %1135 = vmatprep.subr.bf16.mxu0 %v894
    %1136 = vmatpush1.bf16.msra.mxu0 %v893
    %1137 = vmatprep.subr.bf16.mxu0 %v898
    %1138 = vmatpush1.bf16.msra.mxu0 %v897
    %1139 = vmatprep.subr.bf16.mxu0 %v902
    %1140 = vmatpush1.bf16.msra.mxu0 %v901
    %1141 = vmatprep.subr.bf16.mxu0 %v906
    %1142 = vmatpush1.bf16.msra.mxu0 %v905
    %1143 = vmatprep.subr.bf16.mxu0 %v910
    %1144 = vmatpush1.bf16.msra.mxu0 %v909
    %1145 = vmatprep.subr.bf16.mxu0 %v914
    %1146 = vmatpush1.bf16.msra.mxu0 %v913
    %1147 = vmatprep.subr.bf16.mxu0 %v918
    %1148 = vmatpush1.bf16.msra.mxu0 %v917
    %1149 = vmatprep.subr.bf16.mxu0 %v922
    %1150 = vmatpush1.bf16.msra.mxu0 %v921
    %1151 = vmatprep.subr.bf16.mxu0 %v926
    %1152 = vmatpush1.bf16.msra.mxu0 %v925
    %1153 = vmatprep.mubr.bf16.mxu0 %v328
    %1154 = vmatmul.mubr.bf16.gmra.mrb[0].mxu0 %v327
    %v1155 = vpop.f32.mrb[0].mxu0
    %v1156 = vadd.f32 %v464, %v1155
    %v1157 = vpop.f32.mrb[0].mxu0
    %v1158 = vadd.f32 %v468, %v1157
    %v1159 = vpop.f32.mrb[0].mxu0
    %v1160 = vadd.f32 %v464, %v1159
    %v1161 = vpop.f32.mrb[0].mxu0
    %v1162 = vadd.f32 %v468, %v1161
    %1163 = vdwg.mxu0
    %1164 = vmatprep.subr.bf16.mxu0 %v930
    %1165 = vmatpush1.bf16.msra.mxu0 %v929
    %1166 = vmatprep.subr.bf16.mxu0 %v934
    %1167 = vmatpush1.bf16.msra.mxu0 %v933
    %1168 = vmatprep.subr.bf16.mxu0 %v938
    %1169 = vmatpush1.bf16.msra.mxu0 %v937
    %1170 = vmatprep.subr.bf16.mxu0 %v942
    %1171 = vmatpush1.bf16.msra.mxu0 %v941
    %1172 = vmatprep.subr.bf16.mxu0 %v946
    %1173 = vmatpush1.bf16.msra.mxu0 %v945
    %1174 = vmatprep.subr.bf16.mxu0 %v950
    %1175 = vmatpush1.bf16.msra.mxu0 %v949
    %1176 = vmatprep.subr.bf16.mxu0 %v954
    %1177 = vmatpush1.bf16.msra.mxu0 %v953
    %1178 = vmatprep.subr.bf16.mxu0 %v958
    %1179 = vmatpush1.bf16.msra.mxu0 %v957
    %1180 = vmatprep.subr.bf16.mxu0 %v962
    %1181 = vmatpush1.bf16.msra.mxu0 %v961
    %1182 = vmatprep.subr.bf16.mxu0 %v966
    %1183 = vmatpush1.bf16.msra.mxu0 %v965
    %1184 = vmatprep.subr.bf16.mxu0 %v970
    %1185 = vmatpush1.bf16.msra.mxu0 %v969
    %1186 = vmatprep.subr.bf16.mxu0 %v974
    %1187 = vmatpush1.bf16.msra.mxu0 %v973
    %1188 = vmatprep.subr.bf16.mxu0 %v978
    %1189 = vmatpush1.bf16.msra.mxu0 %v977
    %1190 = vmatprep.subr.bf16.mxu0 %v982
    %1191 = vmatpush1.bf16.msra.mxu0 %v981
    %1192 = vmatprep.subr.bf16.mxu0 %v986
    %1193 = vmatpush1.bf16.msra.mxu0 %v985
    %1194 = vmatprep.subr.bf16.mxu0 %v990
    %1195 = vmatpush1.bf16.msra.mxu0 %v989
    %1196 = vmatprep.mubr.bf16.mxu0 %v330
    %1197 = vmatmul.mubr.bf16.gmra.mrb[0].mxu0 %v329
    %v1198 = vpop.f32.mrb[0].mxu0
    %v1199 = vadd.f32 %v1156, %v1198
    %v1200 = vpop.f32.mrb[0].mxu0
    %v1201 = vadd.f32 %v1158, %v1200
    %v1202 = vpop.f32.mrb[0].mxu0
    %v1203 = vadd.f32 %v1160, %v1202
    %v1204 = vpop.f32.mrb[0].mxu0
    %v1205 = vadd.f32 %v1162, %v1204
    %1206 = vdwg.mxu0
    %1207 = vmatprep.subr.bf16.mxu0 %v868
    %1208 = vmatpush1.bf16.msra.mxu0 %v867
    %1209 = vmatprep.subr.bf16.mxu0 %v872
    %1210 = vmatpush1.bf16.msra.mxu0 %v871
    %1211 = vmatprep.subr.bf16.mxu0 %v876
    %1212 = vmatpush1.bf16.msra.mxu0 %v875
    %1213 = vmatprep.subr.bf16.mxu0 %v880
    %1214 = vmatpush1.bf16.msra.mxu0 %v879
    %1215 = vmatprep.subr.bf16.mxu0 %v884
    %1216 = vmatpush1.bf16.msra.mxu0 %v883
    %1217 = vmatprep.subr.bf16.mxu0 %v888
    %1218 = vmatpush1.bf16.msra.mxu0 %v887
    %1219 = vmatprep.subr.bf16.mxu0 %v892
    %1220 = vmatpush1.bf16.msra.mxu0 %v891
    %1221 = vmatprep.subr.bf16.mxu0 %v896
    %1222 = vmatpush1.bf16.msra.mxu0 %v895
    %1223 = vmatprep.subr.bf16.mxu0 %v900
    %1224 = vmatpush1.bf16.msra.mxu0 %v899
    %1225 = vmatprep.subr.bf16.mxu0 %v904
    %1226 = vmatpush1.bf16.msra.mxu0 %v903
    %1227 = vmatprep.subr.bf16.mxu0 %v908
    %1228 = vmatpush1.bf16.msra.mxu0 %v907
    %1229 = vmatprep.subr.bf16.mxu0 %v912
    %1230 = vmatpush1.bf16.msra.mxu0 %v911
    %1231 = vmatprep.subr.bf16.mxu0 %v916
    %1232 = vmatpush1.bf16.msra.mxu0 %v915
    %1233 = vmatprep.subr.bf16.mxu0 %v920
    %1234 = vmatpush1.bf16.msra.mxu0 %v919
    %1235 = vmatprep.subr.bf16.mxu0 %v924
    %1236 = vmatpush1.bf16.msra.mxu0 %v923
    %1237 = vmatprep.subr.bf16.mxu0 %v928
    %1238 = vmatpush1.bf16.msra.mxu0 %v927
    %1239 = vmatprep.mubr.bf16.mxu0 %v328
    %1240 = vmatmul.mubr.bf16.gmra.mrb[0].mxu0 %v327
    %v1241 = vpop.f32.mrb[0].mxu0
    %v1242 = vadd.f32 %v472, %v1241
    %v1243 = vpop.f32.mrb[0].mxu0
    %v1244 = vadd.f32 %v476, %v1243
    %v1245 = vpop.f32.mrb[0].mxu0
    %v1246 = vadd.f32 %v472, %v1245
    %v1247 = vpop.f32.mrb[0].mxu0
    %v1248 = vadd.f32 %v476, %v1247
    %1249 = vdwg.mxu0
    %1250 = vmatprep.subr.bf16.mxu0 %v932
    %1251 = vmatpush1.bf16.msra.mxu0 %v931
    %1252 = vmatprep.subr.bf16.mxu0 %v936
    %1253 = vmatpush1.bf16.msra.mxu0 %v935
    %1254 = vmatprep.subr.bf16.mxu0 %v940
    %1255 = vmatpush1.bf16.msra.mxu0 %v939
    %1256 = vmatprep.subr.bf16.mxu0 %v944
    %1257 = vmatpush1.bf16.msra.mxu0 %v943
    %1258 = vmatprep.subr.bf16.mxu0 %v948
    %1259 = vmatpush1.bf16.msra.mxu0 %v947
    %1260 = vmatprep.subr.bf16.mxu0 %v952
    %1261 = vmatpush1.bf16.msra.mxu0 %v951
    %1262 = vmatprep.subr.bf16.mxu0 %v956
    %1263 = vmatpush1.bf16.msra.mxu0 %v955
    %1264 = vmatprep.subr.bf16.mxu0 %v960
    %1265 = vmatpush1.bf16.msra.mxu0 %v959
    %1266 = vmatprep.subr.bf16.mxu0 %v964
    %1267 = vmatpush1.bf16.msra.mxu0 %v963
    %1268 = vmatprep.subr.bf16.mxu0 %v968
    %1269 = vmatpush1.bf16.msra.mxu0 %v967
    %1270 = vmatprep.subr.bf16.mxu0 %v972
    %1271 = vmatpush1.bf16.msra.mxu0 %v971
    %1272 = vmatprep.subr.bf16.mxu0 %v976
    %1273 = vmatpush1.bf16.msra.mxu0 %v975
    %1274 = vmatprep.subr.bf16.mxu0 %v980
    %1275 = vmatpush1.bf16.msra.mxu0 %v979
    %1276 = vmatprep.subr.bf16.mxu0 %v984
    %1277 = vmatpush1.bf16.msra.mxu0 %v983
    %1278 = vmatprep.subr.bf16.mxu0 %v988
    %1279 = vmatpush1.bf16.msra.mxu0 %v987
    %1280 = vmatprep.subr.bf16.mxu0 %v992
    %1281 = vmatpush1.bf16.msra.mxu0 %v991
    %1282 = vmatprep.mubr.bf16.mxu0 %v330
    %1283 = vmatmul.mubr.bf16.gmra.mrb[0].mxu0 %v329
    %v1284 = vpop.f32.mrb[0].mxu0
    %v1285 = vadd.f32 %v1242, %v1284
    %v1286 = vpop.f32.mrb[0].mxu0
    %v1287 = vadd.f32 %v1244, %v1286
    %v1288 = vpop.f32.mrb[0].mxu0
    %v1289 = vadd.f32 %v1246, %v1288
    %v1290 = vpop.f32.mrb[0].mxu0
    %v1291 = vadd.f32 %v1248, %v1290
    %1292 = vdwg.mxu0
    %v1293 = vmul.f32 %v1199, 0.01
    %v1294 = vmul.f32 %v1201, 0.01
    %v1295 = vmul.f32 %v1285, 0.01
    %v1296 = vmul.f32 %v1287, 0.01
    %v1297 = vmul.f32 %v1203, 0.01
    %v1298 = vmul.f32 %v1205, 0.01
    %v1299 = vmul.f32 %v1289, 0.01
    %v1300 = vmul.f32 %v1291, 0.01
    %v1301 = vmax.f32 %v1199, %v1293
    %v1302 = vmax.f32 %v1201, %v1294
    %v1303 = vmax.f32 %v1285, %v1295
    %v1304 = vmax.f32 %v1287, %v1296
    %v1305 = vmax.f32 %v1203, %v1297
    %v1306 = vmax.f32 %v1205, %v1298
    %v1307 = vmax.f32 %v1289, %v1299
    %v1308 = vmax.f32 %v1291, %v1300
    %v1309 = vpack.c.bf16 %v1305, %v1301
    %v1310 = vpack.c.bf16 %v1306, %v1302
    %v1311 = vpack.c.bf16 %v1307, %v1303
    %v1312 = vpack.c.bf16 %v1308, %v1304
    %v1313 = vld [vmem:[#allocation6] sm:$0xff]
    %v1314 = vld [vmem:[#allocation6 + $0x8] sm:$0xff]
    %v1315 = vld [vmem:[#allocation6 + $0x10] sm:$0xff]
    %v1316 = vld [vmem:[#allocation6 + $0x18] sm:$0xff]
    %v1317 = vld [vmem:[#allocation6 + $0x20] sm:$0xff]
    %v1318 = vld [vmem:[#allocation6 + $0x28] sm:$0xff]
    %v1319 = vld [vmem:[#allocation6 + $0x30] sm:$0xff]
    %v1320 = vld [vmem:[#allocation6 + $0x38] sm:$0xff]
    %v1321 = vld [vmem:[#allocation6 + $0x40] sm:$0xff]
    %v1322 = vld [vmem:[#allocation6 + $0x48] sm:$0xff]
    %v1323 = vld [vmem:[#allocation6 + $0x50] sm:$0xff]
    %v1324 = vld [vmem:[#allocation6 + $0x58] sm:$0xff]
    %v1325 = vld [vmem:[#allocation6 + $0x60] sm:$0xff]
    %v1326 = vld [vmem:[#allocation6 + $0x68] sm:$0xff]
    %v1327 = vld [vmem:[#allocation6 + $0x70] sm:$0xff]
    %v1328 = vld [vmem:[#allocation6 + $0x78] sm:$0xff]
    %v1329 = vld [vmem:[#allocation6 + $0x80] sm:$0xff]
    %v1330 = vld [vmem:[#allocation6 + $0x88] sm:$0xff]
    %v1331 = vld [vmem:[#allocation6 + $0x90] sm:$0xff]
    %v1332 = vld [vmem:[#allocation6 + $0x98] sm:$0xff]
    %v1333 = vld [vmem:[#allocation6 + $0xa0] sm:$0xff]
    %v1334 = vld [vmem:[#allocation6 + $0xa8] sm:$0xff]
    %v1335 = vld [vmem:[#allocation6 + $0xb0] sm:$0xff]
    %v1336 = vld [vmem:[#allocation6 + $0xb8] sm:$0xff]
    %v1337 = vld [vmem:[#allocation6 + $0xc0] sm:$0xff]
    %v1338 = vld [vmem:[#allocation6 + $0xc8] sm:$0xff]
    %v1339 = vld [vmem:[#allocation6 + $0xd0] sm:$0xff]
    %v1340 = vld [vmem:[#allocation6 + $0xd8] sm:$0xff]
    %v1341 = vld [vmem:[#allocation6 + $0xe0] sm:$0xff]
    %v1342 = vld [vmem:[#allocation6 + $0xe8] sm:$0xff]
    %v1343 = vld [vmem:[#allocation6 + $0xf0] sm:$0xff]
    %v1344 = vld [vmem:[#allocation6 + $0xf8] sm:$0xff]
    %v1345 = vld [vmem:[#allocation6 + $0x100] sm:$0xff]
    %v1346 = vld [vmem:[#allocation6 + $0x108] sm:$0xff]
    %v1347 = vld [vmem:[#allocation6 + $0x110] sm:$0xff]
    %v1348 = vld [vmem:[#allocation6 + $0x118] sm:$0xff]
    %v1349 = vld [vmem:[#allocation6 + $0x120] sm:$0xff]
    %v1350 = vld [vmem:[#allocation6 + $0x128] sm:$0xff]
    %v1351 = vld [vmem:[#allocation6 + $0x130] sm:$0xff]
    %v1352 = vld [vmem:[#allocation6 + $0x138] sm:$0xff]
    %v1353 = vld [vmem:[#allocation6 + $0x140] sm:$0xff]
    %v1354 = vld [vmem:[#allocation6 + $0x148] sm:$0xff]
    %v1355 = vld [vmem:[#allocation6 + $0x150] sm:$0xff]
    %v1356 = vld [vmem:[#allocation6 + $0x158] sm:$0xff]
    %v1357 = vld [vmem:[#allocation6 + $0x160] sm:$0xff]
    %v1358 = vld [vmem:[#allocation6 + $0x168] sm:$0xff]
    %v1359 = vld [vmem:[#allocation6 + $0x170] sm:$0xff]
    %v1360 = vld [vmem:[#allocation6 + $0x178] sm:$0xff]
    %v1361 = vld [vmem:[#allocation6 + $0x180] sm:$0xff]
    %v1362 = vld [vmem:[#allocation6 + $0x188] sm:$0xff]
    %v1363 = vld [vmem:[#allocation6 + $0x190] sm:$0xff]
    %v1364 = vld [vmem:[#allocation6 + $0x198] sm:$0xff]
    %v1365 = vld [vmem:[#allocation6 + $0x1a0] sm:$0xff]
    %v1366 = vld [vmem:[#allocation6 + $0x1a8] sm:$0xff]
    %v1367 = vld [vmem:[#allocation6 + $0x1b0] sm:$0xff]
    %v1368 = vld [vmem:[#allocation6 + $0x1b8] sm:$0xff]
    %v1369 = vld [vmem:[#allocation6 + $0x1c0] sm:$0xff]
    %v1370 = vld [vmem:[#allocation6 + $0x1c8] sm:$0xff]
    %v1371 = vld [vmem:[#allocation6 + $0x1d0] sm:$0xff]
    %v1372 = vld [vmem:[#allocation6 + $0x1d8] sm:$0xff]
    %v1373 = vld [vmem:[#allocation6 + $0x1e0] sm:$0xff]
    %v1374 = vld [vmem:[#allocation6 + $0x1e8] sm:$0xff]
    %v1375 = vld [vmem:[#allocation6 + $0x1f0] sm:$0xff]
    %v1376 = vld [vmem:[#allocation6 + $0x1f8] sm:$0xff]
    %v1377 = vld [vmem:[#allocation6 + $0x200] sm:$0xff]
    %v1378 = vld [vmem:[#allocation6 + $0x208] sm:$0xff]
    %v1379 = vld [vmem:[#allocation6 + $0x210] sm:$0xff]
    %v1380 = vld [vmem:[#allocation6 + $0x218] sm:$0xff]
    %v1381 = vld [vmem:[#allocation6 + $0x220] sm:$0xff]
    %v1382 = vld [vmem:[#allocation6 + $0x228] sm:$0xff]
    %v1383 = vld [vmem:[#allocation6 + $0x230] sm:$0xff]
    %v1384 = vld [vmem:[#allocation6 + $0x238] sm:$0xff]
    %v1385 = vld [vmem:[#allocation6 + $0x240] sm:$0xff]
    %v1386 = vld [vmem:[#allocation6 + $0x248] sm:$0xff]
    %v1387 = vld [vmem:[#allocation6 + $0x250] sm:$0xff]
    %v1388 = vld [vmem:[#allocation6 + $0x258] sm:$0xff]
    %v1389 = vld [vmem:[#allocation6 + $0x260] sm:$0xff]
    %v1390 = vld [vmem:[#allocation6 + $0x268] sm:$0xff]
    %v1391 = vld [vmem:[#allocation6 + $0x270] sm:$0xff]
    %v1392 = vld [vmem:[#allocation6 + $0x278] sm:$0xff]
    %v1393 = vld [vmem:[#allocation6 + $0x280] sm:$0xff]
    %v1394 = vld [vmem:[#allocation6 + $0x288] sm:$0xff]
    %v1395 = vld [vmem:[#allocation6 + $0x290] sm:$0xff]
    %v1396 = vld [vmem:[#allocation6 + $0x298] sm:$0xff]
    %v1397 = vld [vmem:[#allocation6 + $0x2a0] sm:$0xff]
    %v1398 = vld [vmem:[#allocation6 + $0x2a8] sm:$0xff]
    %v1399 = vld [vmem:[#allocation6 + $0x2b0] sm:$0xff]
    %v1400 = vld [vmem:[#allocation6 + $0x2b8] sm:$0xff]
    %v1401 = vld [vmem:[#allocation6 + $0x2c0] sm:$0xff]
    %v1402 = vld [vmem:[#allocation6 + $0x2c8] sm:$0xff]
    %v1403 = vld [vmem:[#allocation6 + $0x2d0] sm:$0xff]
    %v1404 = vld [vmem:[#allocation6 + $0x2d8] sm:$0xff]
    %v1405 = vld [vmem:[#allocation6 + $0x2e0] sm:$0xff]
    %v1406 = vld [vmem:[#allocation6 + $0x2e8] sm:$0xff]
    %v1407 = vld [vmem:[#allocation6 + $0x2f0] sm:$0xff]
    %v1408 = vld [vmem:[#allocation6 + $0x2f8] sm:$0xff]
    %v1409 = vld [vmem:[#allocation6 + $0x300] sm:$0xff]
    %v1410 = vld [vmem:[#allocation6 + $0x308] sm:$0xff]
    %v1411 = vld [vmem:[#allocation6 + $0x310] sm:$0xff]
    %v1412 = vld [vmem:[#allocation6 + $0x318] sm:$0xff]
    %v1413 = vld [vmem:[#allocation6 + $0x320] sm:$0xff]
    %v1414 = vld [vmem:[#allocation6 + $0x328] sm:$0xff]
    %v1415 = vld [vmem:[#allocation6 + $0x330] sm:$0xff]
    %v1416 = vld [vmem:[#allocation6 + $0x338] sm:$0xff]
    %v1417 = vld [vmem:[#allocation6 + $0x340] sm:$0xff]
    %v1418 = vld [vmem:[#allocation6 + $0x348] sm:$0xff]
    %v1419 = vld [vmem:[#allocation6 + $0x350] sm:$0xff]
    %v1420 = vld [vmem:[#allocation6 + $0x358] sm:$0xff]
    %v1421 = vld [vmem:[#allocation6 + $0x360] sm:$0xff]
    %v1422 = vld [vmem:[#allocation6 + $0x368] sm:$0xff]
    %v1423 = vld [vmem:[#allocation6 + $0x370] sm:$0xff]
    %v1424 = vld [vmem:[#allocation6 + $0x378] sm:$0xff]
    %v1425 = vld [vmem:[#allocation6 + $0x380] sm:$0xff]
    %v1426 = vld [vmem:[#allocation6 + $0x388] sm:$0xff]
    %v1427 = vld [vmem:[#allocation6 + $0x390] sm:$0xff]
    %v1428 = vld [vmem:[#allocation6 + $0x398] sm:$0xff]
    %v1429 = vld [vmem:[#allocation6 + $0x3a0] sm:$0xff]
    %v1430 = vld [vmem:[#allocation6 + $0x3a8] sm:$0xff]
    %v1431 = vld [vmem:[#allocation6 + $0x3b0] sm:$0xff]
    %v1432 = vld [vmem:[#allocation6 + $0x3b8] sm:$0xff]
    %v1433 = vld [vmem:[#allocation6 + $0x3c0] sm:$0xff]
    %v1434 = vld [vmem:[#allocation6 + $0x3c8] sm:$0xff]
    %v1435 = vld [vmem:[#allocation6 + $0x3d0] sm:$0xff]
    %v1436 = vld [vmem:[#allocation6 + $0x3d8] sm:$0xff]
    %v1437 = vld [vmem:[#allocation6 + $0x3e0] sm:$0xff]
    %v1438 = vld [vmem:[#allocation6 + $0x3e8] sm:$0xff]
    %v1439 = vld [vmem:[#allocation6 + $0x3f0] sm:$0xff]
    %v1440 = vld [vmem:[#allocation6 + $0x3f8] sm:$0xff]
    %v1441 = vld [vmem:[%s8] sm:$0xf]
    %v1443 = vlaneseq
    %v1444 = vshrl.u32 %v1443, 7
    %v1445 = vsub.s32 0, %v1444
    %v1446 = vrot.slane %v1441, %v1445
    %v1447 = vlaneseq
    %v1448 = vshrl.u32 %v1447, 7
    %v1449 = vsub.s32 1, %v1448
    %v1450 = vrot.slane %v1441, %v1449
    %v1451 = vlaneseq
    %v1452 = vshrl.u32 %v1451, 7
    %v1453 = vsub.s32 2, %v1452
    %v1454 = vrot.slane %v1441, %v1453
    %v1455 = vlaneseq
    %v1456 = vshrl.u32 %v1455, 7
    %v1457 = vsub.s32 3, %v1456
    %v1458 = vrot.slane %v1441, %v1457
    %v1591 = vunpack.c.l.b16 %v1313
    %v1592 = vunpack.c.h.b16 %v1313
    %v1593 = vunpack.c.l.b16 %v1314
    %v1594 = vunpack.c.h.b16 %v1314
    %v1595 = vunpack.c.l.b16 %v1315
    %v1596 = vunpack.c.h.b16 %v1315
    %v1597 = vunpack.c.l.b16 %v1316
    %v1598 = vunpack.c.h.b16 %v1316
    %v1599 = vunpack.c.l.b16 %v1317
    %v1600 = vunpack.c.h.b16 %v1317
    %v1601 = vunpack.c.l.b16 %v1318
    %v1602 = vunpack.c.h.b16 %v1318
    %v1603 = vunpack.c.l.b16 %v1319
    %v1604 = vunpack.c.h.b16 %v1319
    %v1605 = vunpack.c.l.b16 %v1320
    %v1606 = vunpack.c.h.b16 %v1320
    %v1607 = vunpack.c.l.b16 %v1321
    %v1608 = vunpack.c.h.b16 %v1321
    %v1609 = vunpack.c.l.b16 %v1322
    %v1610 = vunpack.c.h.b16 %v1322
    %v1611 = vunpack.c.l.b16 %v1323
    %v1612 = vunpack.c.h.b16 %v1323
    %v1613 = vunpack.c.l.b16 %v1324
    %v1614 = vunpack.c.h.b16 %v1324
    %v1615 = vunpack.c.l.b16 %v1325
    %v1616 = vunpack.c.h.b16 %v1325
    %v1617 = vunpack.c.l.b16 %v1326
    %v1618 = vunpack.c.h.b16 %v1326
    %v1619 = vunpack.c.l.b16 %v1327
    %v1620 = vunpack.c.h.b16 %v1327
    %v1621 = vunpack.c.l.b16 %v1328
    %v1622 = vunpack.c.h.b16 %v1328
    %v1623 = vunpack.c.l.b16 %v1329
    %v1624 = vunpack.c.h.b16 %v1329
    %v1625 = vunpack.c.l.b16 %v1330
    %v1626 = vunpack.c.h.b16 %v1330
    %v1627 = vunpack.c.l.b16 %v1331
    %v1628 = vunpack.c.h.b16 %v1331
    %v1629 = vunpack.c.l.b16 %v1332
    %v1630 = vunpack.c.h.b16 %v1332
    %v1631 = vunpack.c.l.b16 %v1333
    %v1632 = vunpack.c.h.b16 %v1333
    %v1633 = vunpack.c.l.b16 %v1334
    %v1634 = vunpack.c.h.b16 %v1334
    %v1635 = vunpack.c.l.b16 %v1335
    %v1636 = vunpack.c.h.b16 %v1335
    %v1637 = vunpack.c.l.b16 %v1336
    %v1638 = vunpack.c.h.b16 %v1336
    %v1639 = vunpack.c.l.b16 %v1337
    %v1640 = vunpack.c.h.b16 %v1337
    %v1641 = vunpack.c.l.b16 %v1338
    %v1642 = vunpack.c.h.b16 %v1338
    %v1643 = vunpack.c.l.b16 %v1339
    %v1644 = vunpack.c.h.b16 %v1339
    %v1645 = vunpack.c.l.b16 %v1340
    %v1646 = vunpack.c.h.b16 %v1340
    %v1647 = vunpack.c.l.b16 %v1341
    %v1648 = vunpack.c.h.b16 %v1341
    %v1649 = vunpack.c.l.b16 %v1342
    %v1650 = vunpack.c.h.b16 %v1342
    %v1651 = vunpack.c.l.b16 %v1343
    %v1652 = vunpack.c.h.b16 %v1343
    %v1653 = vunpack.c.l.b16 %v1344
    %v1654 = vunpack.c.h.b16 %v1344
    %v1655 = vunpack.c.l.b16 %v1345
    %v1656 = vunpack.c.h.b16 %v1345
    %v1657 = vunpack.c.l.b16 %v1346
    %v1658 = vunpack.c.h.b16 %v1346
    %v1659 = vunpack.c.l.b16 %v1347
    %v1660 = vunpack.c.h.b16 %v1347
    %v1661 = vunpack.c.l.b16 %v1348
    %v1662 = vunpack.c.h.b16 %v1348
    %v1663 = vunpack.c.l.b16 %v1349
    %v1664 = vunpack.c.h.b16 %v1349
    %v1665 = vunpack.c.l.b16 %v1350
    %v1666 = vunpack.c.h.b16 %v1350
    %v1667 = vunpack.c.l.b16 %v1351
    %v1668 = vunpack.c.h.b16 %v1351
    %v1669 = vunpack.c.l.b16 %v1352
    %v1670 = vunpack.c.h.b16 %v1352
    %v1671 = vunpack.c.l.b16 %v1353
    %v1672 = vunpack.c.h.b16 %v1353
    %v1673 = vunpack.c.l.b16 %v1354
    %v1674 = vunpack.c.h.b16 %v1354
    %v1675 = vunpack.c.l.b16 %v1355
    %v1676 = vunpack.c.h.b16 %v1355
    %v1677 = vunpack.c.l.b16 %v1356
    %v1678 = vunpack.c.h.b16 %v1356
    %v1679 = vunpack.c.l.b16 %v1357
    %v1680 = vunpack.c.h.b16 %v1357
    %v1681 = vunpack.c.l.b16 %v1358
    %v1682 = vunpack.c.h.b16 %v1358
    %v1683 = vunpack.c.l.b16 %v1359
    %v1684 = vunpack.c.h.b16 %v1359
    %v1685 = vunpack.c.l.b16 %v1360
    %v1686 = vunpack.c.h.b16 %v1360
    %v1687 = vunpack.c.l.b16 %v1361
    %v1688 = vunpack.c.h.b16 %v1361
    %v1689 = vunpack.c.l.b16 %v1362
    %v1690 = vunpack.c.h.b16 %v1362
    %v1691 = vunpack.c.l.b16 %v1363
    %v1692 = vunpack.c.h.b16 %v1363
    %v1693 = vunpack.c.l.b16 %v1364
    %v1694 = vunpack.c.h.b16 %v1364
    %v1695 = vunpack.c.l.b16 %v1365
    %v1696 = vunpack.c.h.b16 %v1365
    %v1697 = vunpack.c.l.b16 %v1366
    %v1698 = vunpack.c.h.b16 %v1366
    %v1699 = vunpack.c.l.b16 %v1367
    %v1700 = vunpack.c.h.b16 %v1367
    %v1701 = vunpack.c.l.b16 %v1368
    %v1702 = vunpack.c.h.b16 %v1368
    %v1703 = vunpack.c.l.b16 %v1369
    %v1704 = vunpack.c.h.b16 %v1369
    %v1705 = vunpack.c.l.b16 %v1370
    %v1706 = vunpack.c.h.b16 %v1370
    %v1707 = vunpack.c.l.b16 %v1371
    %v1708 = vunpack.c.h.b16 %v1371
    %v1709 = vunpack.c.l.b16 %v1372
    %v1710 = vunpack.c.h.b16 %v1372
    %v1711 = vunpack.c.l.b16 %v1373
    %v1712 = vunpack.c.h.b16 %v1373
    %v1713 = vunpack.c.l.b16 %v1374
    %v1714 = vunpack.c.h.b16 %v1374
    %v1715 = vunpack.c.l.b16 %v1375
    %v1716 = vunpack.c.h.b16 %v1375
    %v1717 = vunpack.c.l.b16 %v1376
    %v1718 = vunpack.c.h.b16 %v1376
    %v1719 = vunpack.c.l.b16 %v1377
    %v1720 = vunpack.c.h.b16 %v1377
    %v1721 = vunpack.c.l.b16 %v1378
    %v1722 = vunpack.c.h.b16 %v1378
    %v1723 = vunpack.c.l.b16 %v1379
    %v1724 = vunpack.c.h.b16 %v1379
    %v1725 = vunpack.c.l.b16 %v1380
    %v1726 = vunpack.c.h.b16 %v1380
    %v1727 = vunpack.c.l.b16 %v1381
    %v1728 = vunpack.c.h.b16 %v1381
    %v1729 = vunpack.c.l.b16 %v1382
    %v1730 = vunpack.c.h.b16 %v1382
    %v1731 = vunpack.c.l.b16 %v1383
    %v1732 = vunpack.c.h.b16 %v1383
    %v1733 = vunpack.c.l.b16 %v1384
    %v1734 = vunpack.c.h.b16 %v1384
    %v1735 = vunpack.c.l.b16 %v1385
    %v1736 = vunpack.c.h.b16 %v1385
    %v1737 = vunpack.c.l.b16 %v1386
    %v1738 = vunpack.c.h.b16 %v1386
    %v1739 = vunpack.c.l.b16 %v1387
    %v1740 = vunpack.c.h.b16 %v1387
    %v1741 = vunpack.c.l.b16 %v1388
    %v1742 = vunpack.c.h.b16 %v1388
    %v1743 = vunpack.c.l.b16 %v1389
    %v1744 = vunpack.c.h.b16 %v1389
    %v1745 = vunpack.c.l.b16 %v1390
    %v1746 = vunpack.c.h.b16 %v1390
    %v1747 = vunpack.c.l.b16 %v1391
    %v1748 = vunpack.c.h.b16 %v1391
    %v1749 = vunpack.c.l.b16 %v1392
    %v1750 = vunpack.c.h.b16 %v1392
    %v1751 = vunpack.c.l.b16 %v1393
    %v1752 = vunpack.c.h.b16 %v1393
    %v1753 = vunpack.c.l.b16 %v1394
    %v1754 = vunpack.c.h.b16 %v1394
    %v1755 = vunpack.c.l.b16 %v1395
    %v1756 = vunpack.c.h.b16 %v1395
    %v1757 = vunpack.c.l.b16 %v1396
    %v1758 = vunpack.c.h.b16 %v1396
    %v1759 = vunpack.c.l.b16 %v1397
    %v1760 = vunpack.c.h.b16 %v1397
    %v1761 = vunpack.c.l.b16 %v1398
    %v1762 = vunpack.c.h.b16 %v1398
    %v1763 = vunpack.c.l.b16 %v1399
    %v1764 = vunpack.c.h.b16 %v1399
    %v1765 = vunpack.c.l.b16 %v1400
    %v1766 = vunpack.c.h.b16 %v1400
    %v1767 = vunpack.c.l.b16 %v1401
    %v1768 = vunpack.c.h.b16 %v1401
    %v1769 = vunpack.c.l.b16 %v1402
    %v1770 = vunpack.c.h.b16 %v1402
    %v1771 = vunpack.c.l.b16 %v1403
    %v1772 = vunpack.c.h.b16 %v1403
    %v1773 = vunpack.c.l.b16 %v1404
    %v1774 = vunpack.c.h.b16 %v1404
    %v1775 = vunpack.c.l.b16 %v1405
    %v1776 = vunpack.c.h.b16 %v1405
    %v1777 = vunpack.c.l.b16 %v1406
    %v1778 = vunpack.c.h.b16 %v1406
    %v1779 = vunpack.c.l.b16 %v1407
    %v1780 = vunpack.c.h.b16 %v1407
    %v1781 = vunpack.c.l.b16 %v1408
    %v1782 = vunpack.c.h.b16 %v1408
    %v1783 = vunpack.c.l.b16 %v1409
    %v1784 = vunpack.c.h.b16 %v1409
    %v1785 = vunpack.c.l.b16 %v1410
    %v1786 = vunpack.c.h.b16 %v1410
    %v1787 = vunpack.c.l.b16 %v1411
    %v1788 = vunpack.c.h.b16 %v1411
    %v1789 = vunpack.c.l.b16 %v1412
    %v1790 = vunpack.c.h.b16 %v1412
    %v1791 = vunpack.c.l.b16 %v1413
    %v1792 = vunpack.c.h.b16 %v1413
    %v1793 = vunpack.c.l.b16 %v1414
    %v1794 = vunpack.c.h.b16 %v1414
    %v1795 = vunpack.c.l.b16 %v1415
    %v1796 = vunpack.c.h.b16 %v1415
    %v1797 = vunpack.c.l.b16 %v1416
    %v1798 = vunpack.c.h.b16 %v1416
    %v1799 = vunpack.c.l.b16 %v1417
    %v1800 = vunpack.c.h.b16 %v1417
    %v1801 = vunpack.c.l.b16 %v1418
    %v1802 = vunpack.c.h.b16 %v1418
    %v1803 = vunpack.c.l.b16 %v1419
    %v1804 = vunpack.c.h.b16 %v1419
    %v1805 = vunpack.c.l.b16 %v1420
    %v1806 = vunpack.c.h.b16 %v1420
    %v1807 = vunpack.c.l.b16 %v1421
    %v1808 = vunpack.c.h.b16 %v1421
    %v1809 = vunpack.c.l.b16 %v1422
    %v1810 = vunpack.c.h.b16 %v1422
    %v1811 = vunpack.c.l.b16 %v1423
    %v1812 = vunpack.c.h.b16 %v1423
    %v1813 = vunpack.c.l.b16 %v1424
    %v1814 = vunpack.c.h.b16 %v1424
    %v1815 = vunpack.c.l.b16 %v1425
    %v1816 = vunpack.c.h.b16 %v1425
    %v1817 = vunpack.c.l.b16 %v1426
    %v1818 = vunpack.c.h.b16 %v1426
    %v1819 = vunpack.c.l.b16 %v1427
    %v1820 = vunpack.c.h.b16 %v1427
    %v1821 = vunpack.c.l.b16 %v1428
    %v1822 = vunpack.c.h.b16 %v1428
    %v1823 = vunpack.c.l.b16 %v1429
    %v1824 = vunpack.c.h.b16 %v1429
    %v1825 = vunpack.c.l.b16 %v1430
    %v1826 = vunpack.c.h.b16 %v1430
    %v1827 = vunpack.c.l.b16 %v1431
    %v1828 = vunpack.c.h.b16 %v1431
    %v1829 = vunpack.c.l.b16 %v1432
    %v1830 = vunpack.c.h.b16 %v1432
    %v1831 = vunpack.c.l.b16 %v1433
    %v1832 = vunpack.c.h.b16 %v1433
    %v1833 = vunpack.c.l.b16 %v1434
    %v1834 = vunpack.c.h.b16 %v1434
    %v1835 = vunpack.c.l.b16 %v1435
    %v1836 = vunpack.c.h.b16 %v1435
    %v1837 = vunpack.c.l.b16 %v1436
    %v1838 = vunpack.c.h.b16 %v1436
    %v1839 = vunpack.c.l.b16 %v1437
    %v1840 = vunpack.c.h.b16 %v1437
    %v1841 = vunpack.c.l.b16 %v1438
    %v1842 = vunpack.c.h.b16 %v1438
    %v1843 = vunpack.c.l.b16 %v1439
    %v1844 = vunpack.c.h.b16 %v1439
    %v1845 = vunpack.c.l.b16 %v1440
    %v1846 = vunpack.c.h.b16 %v1440
    %v1847 = vpack.c.b16 %v1595, %v1591
    %v1848 = vpack.c.b16 %v1596, %v1592
    %v1849 = vpack.c.b16 %v1597, %v1593
    %v1850 = vpack.c.b16 %v1598, %v1594
    %v1851 = vpack.c.b16 %v1603, %v1599
    %v1852 = vpack.c.b16 %v1604, %v1600
    %v1853 = vpack.c.b16 %v1605, %v1601
    %v1854 = vpack.c.b16 %v1606, %v1602
    %v1855 = vpack.c.b16 %v1611, %v1607
    %v1856 = vpack.c.b16 %v1612, %v1608
    %v1857 = vpack.c.b16 %v1613, %v1609
    %v1858 = vpack.c.b16 %v1614, %v1610
    %v1859 = vpack.c.b16 %v1619, %v1615
    %v1860 = vpack.c.b16 %v1620, %v1616
    %v1861 = vpack.c.b16 %v1621, %v1617
    %v1862 = vpack.c.b16 %v1622, %v1618
    %v1863 = vpack.c.b16 %v1627, %v1623
    %v1864 = vpack.c.b16 %v1628, %v1624
    %v1865 = vpack.c.b16 %v1629, %v1625
    %v1866 = vpack.c.b16 %v1630, %v1626
    %v1867 = vpack.c.b16 %v1635, %v1631
    %v1868 = vpack.c.b16 %v1636, %v1632
    %v1869 = vpack.c.b16 %v1637, %v1633
    %v1870 = vpack.c.b16 %v1638, %v1634
    %v1871 = vpack.c.b16 %v1643, %v1639
    %v1872 = vpack.c.b16 %v1644, %v1640
    %v1873 = vpack.c.b16 %v1645, %v1641
    %v1874 = vpack.c.b16 %v1646, %v1642
    %v1875 = vpack.c.b16 %v1651, %v1647
    %v1876 = vpack.c.b16 %v1652, %v1648
    %v1877 = vpack.c.b16 %v1653, %v1649
    %v1878 = vpack.c.b16 %v1654, %v1650
    %v1879 = vpack.c.b16 %v1659, %v1655
    %v1880 = vpack.c.b16 %v1660, %v1656
    %v1881 = vpack.c.b16 %v1661, %v1657
    %v1882 = vpack.c.b16 %v1662, %v1658
    %v1883 = vpack.c.b16 %v1667, %v1663
    %v1884 = vpack.c.b16 %v1668, %v1664
    %v1885 = vpack.c.b16 %v1669, %v1665
    %v1886 = vpack.c.b16 %v1670, %v1666
    %v1887 = vpack.c.b16 %v1675, %v1671
    %v1888 = vpack.c.b16 %v1676, %v1672
    %v1889 = vpack.c.b16 %v1677, %v1673
    %v1890 = vpack.c.b16 %v1678, %v1674
    %v1891 = vpack.c.b16 %v1683, %v1679
    %v1892 = vpack.c.b16 %v1684, %v1680
    %v1893 = vpack.c.b16 %v1685, %v1681
    %v1894 = vpack.c.b16 %v1686, %v1682
    %v1895 = vpack.c.b16 %v1691, %v1687
    %v1896 = vpack.c.b16 %v1692, %v1688
    %v1897 = vpack.c.b16 %v1693, %v1689
    %v1898 = vpack.c.b16 %v1694, %v1690
    %v1899 = vpack.c.b16 %v1699, %v1695
    %v1900 = vpack.c.b16 %v1700, %v1696
    %v1901 = vpack.c.b16 %v1701, %v1697
    %v1902 = vpack.c.b16 %v1702, %v1698
    %v1903 = vpack.c.b16 %v1707, %v1703
    %v1904 = vpack.c.b16 %v1708, %v1704
    %v1905 = vpack.c.b16 %v1709, %v1705
    %v1906 = vpack.c.b16 %v1710, %v1706
    %v1907 = vpack.c.b16 %v1715, %v1711
    %v1908 = vpack.c.b16 %v1716, %v1712
    %v1909 = vpack.c.b16 %v1717, %v1713
    %v1910 = vpack.c.b16 %v1718, %v1714
    %v1911 = vpack.c.b16 %v1723, %v1719
    %v1912 = vpack.c.b16 %v1724, %v1720
    %v1913 = vpack.c.b16 %v1725, %v1721
    %v1914 = vpack.c.b16 %v1726, %v1722
    %v1915 = vpack.c.b16 %v1731, %v1727
    %v1916 = vpack.c.b16 %v1732, %v1728
    %v1917 = vpack.c.b16 %v1733, %v1729
    %v1918 = vpack.c.b16 %v1734, %v1730
    %v1919 = vpack.c.b16 %v1739, %v1735
    %v1920 = vpack.c.b16 %v1740, %v1736
    %v1921 = vpack.c.b16 %v1741, %v1737
    %v1922 = vpack.c.b16 %v1742, %v1738
    %v1923 = vpack.c.b16 %v1747, %v1743
    %v1924 = vpack.c.b16 %v1748, %v1744
    %v1925 = vpack.c.b16 %v1749, %v1745
    %v1926 = vpack.c.b16 %v1750, %v1746
    %v1927 = vpack.c.b16 %v1755, %v1751
    %v1928 = vpack.c.b16 %v1756, %v1752
    %v1929 = vpack.c.b16 %v1757, %v1753
    %v1930 = vpack.c.b16 %v1758, %v1754
    %v1931 = vpack.c.b16 %v1763, %v1759
    %v1932 = vpack.c.b16 %v1764, %v1760
    %v1933 = vpack.c.b16 %v1765, %v1761
    %v1934 = vpack.c.b16 %v1766, %v1762
    %v1935 = vpack.c.b16 %v1771, %v1767
    %v1936 = vpack.c.b16 %v1772, %v1768
    %v1937 = vpack.c.b16 %v1773, %v1769
    %v1938 = vpack.c.b16 %v1774, %v1770
    %v1939 = vpack.c.b16 %v1779, %v1775
    %v1940 = vpack.c.b16 %v1780, %v1776
    %v1941 = vpack.c.b16 %v1781, %v1777
    %v1942 = vpack.c.b16 %v1782, %v1778
    %v1943 = vpack.c.b16 %v1787, %v1783
    %v1944 = vpack.c.b16 %v1788, %v1784
    %v1945 = vpack.c.b16 %v1789, %v1785
    %v1946 = vpack.c.b16 %v1790, %v1786
    %v1947 = vpack.c.b16 %v1795, %v1791
    %v1948 = vpack.c.b16 %v1796, %v1792
    %v1949 = vpack.c.b16 %v1797, %v1793
    %v1950 = vpack.c.b16 %v1798, %v1794
    %v1951 = vpack.c.b16 %v1803, %v1799
    %v1952 = vpack.c.b16 %v1804, %v1800
    %v1953 = vpack.c.b16 %v1805, %v1801
    %v1954 = vpack.c.b16 %v1806, %v1802
    %v1955 = vpack.c.b16 %v1811, %v1807
    %v1956 = vpack.c.b16 %v1812, %v1808
    %v1957 = vpack.c.b16 %v1813, %v1809
    %v1958 = vpack.c.b16 %v1814, %v1810
    %v1959 = vpack.c.b16 %v1819, %v1815
    %v1960 = vpack.c.b16 %v1820, %v1816
    %v1961 = vpack.c.b16 %v1821, %v1817
    %v1962 = vpack.c.b16 %v1822, %v1818
    %v1963 = vpack.c.b16 %v1827, %v1823
    %v1964 = vpack.c.b16 %v1828, %v1824
    %v1965 = vpack.c.b16 %v1829, %v1825
    %v1966 = vpack.c.b16 %v1830, %v1826
    %v1967 = vpack.c.b16 %v1835, %v1831
    %v1968 = vpack.c.b16 %v1836, %v1832
    %v1969 = vpack.c.b16 %v1837, %v1833
    %v1970 = vpack.c.b16 %v1838, %v1834
    %v1971 = vpack.c.b16 %v1843, %v1839
    %v1972 = vpack.c.b16 %v1844, %v1840
    %v1973 = vpack.c.b16 %v1845, %v1841
    %v1974 = vpack.c.b16 %v1846, %v1842
    %2103 = vmatprep.subr.bf16.mxu0 %v1848
    %2104 = vmatpush1.bf16.msra.mxu0 %v1847
    %2105 = vmatprep.subr.bf16.mxu0 %v1852
    %2106 = vmatpush1.bf16.msra.mxu0 %v1851
    %2107 = vmatprep.subr.bf16.mxu0 %v1856
    %2108 = vmatpush1.bf16.msra.mxu0 %v1855
    %2109 = vmatprep.subr.bf16.mxu0 %v1860
    %2110 = vmatpush1.bf16.msra.mxu0 %v1859
    %2111 = vmatprep.subr.bf16.mxu0 %v1864
    %2112 = vmatpush1.bf16.msra.mxu0 %v1863
    %2113 = vmatprep.subr.bf16.mxu0 %v1868
    %2114 = vmatpush1.bf16.msra.mxu0 %v1867
    %2115 = vmatprep.subr.bf16.mxu0 %v1872
    %2116 = vmatpush1.bf16.msra.mxu0 %v1871
    %2117 = vmatprep.subr.bf16.mxu0 %v1876
    %2118 = vmatpush1.bf16.msra.mxu0 %v1875
    %2119 = vmatprep.subr.bf16.mxu0 %v1880
    %2120 = vmatpush1.bf16.msra.mxu0 %v1879
    %2121 = vmatprep.subr.bf16.mxu0 %v1884
    %2122 = vmatpush1.bf16.msra.mxu0 %v1883
    %2123 = vmatprep.subr.bf16.mxu0 %v1888
    %2124 = vmatpush1.bf16.msra.mxu0 %v1887
    %2125 = vmatprep.subr.bf16.mxu0 %v1892
    %2126 = vmatpush1.bf16.msra.mxu0 %v1891
    %2127 = vmatprep.subr.bf16.mxu0 %v1896
    %2128 = vmatpush1.bf16.msra.mxu0 %v1895
    %2129 = vmatprep.subr.bf16.mxu0 %v1900
    %2130 = vmatpush1.bf16.msra.mxu0 %v1899
    %2131 = vmatprep.subr.bf16.mxu0 %v1904
    %2132 = vmatpush1.bf16.msra.mxu0 %v1903
    %2133 = vmatprep.subr.bf16.mxu0 %v1908
    %2134 = vmatpush1.bf16.msra.mxu0 %v1907
    %2135 = vmatprep.mubr.bf16.mxu0 %v1310
    %2136 = vmatmul.mubr.bf16.gmra.mrb[0].mxu0 %v1309
    %v2137 = vpop.f32.mrb[0].mxu0
    %v2138 = vadd.f32 %v1446, %v2137
    %v2139 = vpop.f32.mrb[0].mxu0
    %v2140 = vadd.f32 %v1450, %v2139
    %v2141 = vpop.f32.mrb[0].mxu0
    %v2142 = vadd.f32 %v1446, %v2141
    %v2143 = vpop.f32.mrb[0].mxu0
    %v2144 = vadd.f32 %v1450, %v2143
    %2145 = vdwg.mxu0
    %2146 = vmatprep.subr.bf16.mxu0 %v1912
    %2147 = vmatpush1.bf16.msra.mxu0 %v1911
    %2148 = vmatprep.subr.bf16.mxu0 %v1916
    %2149 = vmatpush1.bf16.msra.mxu0 %v1915
    %2150 = vmatprep.subr.bf16.mxu0 %v1920
    %2151 = vmatpush1.bf16.msra.mxu0 %v1919
    %2152 = vmatprep.subr.bf16.mxu0 %v1924
    %2153 = vmatpush1.bf16.msra.mxu0 %v1923
    %2154 = vmatprep.subr.bf16.mxu0 %v1928
    %2155 = vmatpush1.bf16.msra.mxu0 %v1927
    %2156 = vmatprep.subr.bf16.mxu0 %v1932
    %2157 = vmatpush1.bf16.msra.mxu0 %v1931
    %2158 = vmatprep.subr.bf16.mxu0 %v1936
    %2159 = vmatpush1.bf16.msra.mxu0 %v1935
    %2160 = vmatprep.subr.bf16.mxu0 %v1940
    %2161 = vmatpush1.bf16.msra.mxu0 %v1939
    %2162 = vmatprep.subr.bf16.mxu0 %v1944
    %2163 = vmatpush1.bf16.msra.mxu0 %v1943
    %2164 = vmatprep.subr.bf16.mxu0 %v1948
    %2165 = vmatpush1.bf16.msra.mxu0 %v1947
    %2166 = vmatprep.subr.bf16.mxu0 %v1952
    %2167 = vmatpush1.bf16.msra.mxu0 %v1951
    %2168 = vmatprep.subr.bf16.mxu0 %v1956
    %2169 = vmatpush1.bf16.msra.mxu0 %v1955
    %2170 = vmatprep.subr.bf16.mxu0 %v1960
    %2171 = vmatpush1.bf16.msra.mxu0 %v1959
    %2172 = vmatprep.subr.bf16.mxu0 %v1964
    %2173 = vmatpush1.bf16.msra.mxu0 %v1963
    %2174 = vmatprep.subr.bf16.mxu0 %v1968
    %2175 = vmatpush1.bf16.msra.mxu0 %v1967
    %2176 = vmatprep.subr.bf16.mxu0 %v1972
    %2177 = vmatpush1.bf16.msra.mxu0 %v1971
    %2178 = vmatprep.mubr.bf16.mxu0 %v1312
    %2179 = vmatmul.mubr.bf16.gmra.mrb[0].mxu0 %v1311
    %v2180 = vpop.f32.mrb[0].mxu0
    %v2181 = vadd.f32 %v2138, %v2180
    %v2182 = vpop.f32.mrb[0].mxu0
    %v2183 = vadd.f32 %v2140, %v2182
    %v2184 = vpop.f32.mrb[0].mxu0
    %v2185 = vadd.f32 %v2142, %v2184
    %v2186 = vpop.f32.mrb[0].mxu0
    %v2187 = vadd.f32 %v2144, %v2186
    %2188 = vdwg.mxu0
    %2189 = vmatprep.subr.bf16.mxu0 %v1850
    %2190 = vmatpush1.bf16.msra.mxu0 %v1849
    %2191 = vmatprep.subr.bf16.mxu0 %v1854
    %2192 = vmatpush1.bf16.msra.mxu0 %v1853
    %2193 = vmatprep.subr.bf16.mxu0 %v1858
    %2194 = vmatpush1.bf16.msra.mxu0 %v1857
    %2195 = vmatprep.subr.bf16.mxu0 %v1862
    %2196 = vmatpush1.bf16.msra.mxu0 %v1861
    %2197 = vmatprep.subr.bf16.mxu0 %v1866
    %2198 = vmatpush1.bf16.msra.mxu0 %v1865
    %2199 = vmatprep.subr.bf16.mxu0 %v1870
    %2200 = vmatpush1.bf16.msra.mxu0 %v1869
    %2201 = vmatprep.subr.bf16.mxu0 %v1874
    %2202 = vmatpush1.bf16.msra.mxu0 %v1873
    %2203 = vmatprep.subr.bf16.mxu0 %v1878
    %2204 = vmatpush1.bf16.msra.mxu0 %v1877
    %2205 = vmatprep.subr.bf16.mxu0 %v1882
    %2206 = vmatpush1.bf16.msra.mxu0 %v1881
    %2207 = vmatprep.subr.bf16.mxu0 %v1886
    %2208 = vmatpush1.bf16.msra.mxu0 %v1885
    %2209 = vmatprep.subr.bf16.mxu0 %v1890
    %2210 = vmatpush1.bf16.msra.mxu0 %v1889
    %2211 = vmatprep.subr.bf16.mxu0 %v1894
    %2212 = vmatpush1.bf16.msra.mxu0 %v1893
    %2213 = vmatprep.subr.bf16.mxu0 %v1898
    %2214 = vmatpush1.bf16.msra.mxu0 %v1897
    %2215 = vmatprep.subr.bf16.mxu0 %v1902
    %2216 = vmatpush1.bf16.msra.mxu0 %v1901
    %2217 = vmatprep.subr.bf16.mxu0 %v1906
    %2218 = vmatpush1.bf16.msra.mxu0 %v1905
    %2219 = vmatprep.subr.bf16.mxu0 %v1910
    %2220 = vmatpush1.bf16.msra.mxu0 %v1909
    %2221 = vmatprep.mubr.bf16.mxu0 %v1310
    %2222 = vmatmul.mubr.bf16.gmra.mrb[0].mxu0 %v1309
    %v2223 = vpop.f32.mrb[0].mxu0
    %v2224 = vadd.f32 %v1454, %v2223
    %v2225 = vpop.f32.mrb[0].mxu0
    %v2226 = vadd.f32 %v1458, %v2225
    %v2227 = vpop.f32.mrb[0].mxu0
    %v2228 = vadd.f32 %v1454, %v2227
    %v2229 = vpop.f32.mrb[0].mxu0
    %v2230 = vadd.f32 %v1458, %v2229
    %2231 = vdwg.mxu0
    %2232 = vmatprep.subr.bf16.mxu0 %v1914
    %2233 = vmatpush1.bf16.msra.mxu0 %v1913
    %2234 = vmatprep.subr.bf16.mxu0 %v1918
    %2235 = vmatpush1.bf16.msra.mxu0 %v1917
    %2236 = vmatprep.subr.bf16.mxu0 %v1922
    %2237 = vmatpush1.bf16.msra.mxu0 %v1921
    %2238 = vmatprep.subr.bf16.mxu0 %v1926
    %2239 = vmatpush1.bf16.msra.mxu0 %v1925
    %2240 = vmatprep.subr.bf16.mxu0 %v1930
    %2241 = vmatpush1.bf16.msra.mxu0 %v1929
    %2242 = vmatprep.subr.bf16.mxu0 %v1934
    %2243 = vmatpush1.bf16.msra.mxu0 %v1933
    %2244 = vmatprep.subr.bf16.mxu0 %v1938
    %2245 = vmatpush1.bf16.msra.mxu0 %v1937
    %2246 = vmatprep.subr.bf16.mxu0 %v1942
    %2247 = vmatpush1.bf16.msra.mxu0 %v1941
    %2248 = vmatprep.subr.bf16.mxu0 %v1946
    %2249 = vmatpush1.bf16.msra.mxu0 %v1945
    %2250 = vmatprep.subr.bf16.mxu0 %v1950
    %2251 = vmatpush1.bf16.msra.mxu0 %v1949
    %2252 = vmatprep.subr.bf16.mxu0 %v1954
    %2253 = vmatpush1.bf16.msra.mxu0 %v1953
    %2254 = vmatprep.subr.bf16.mxu0 %v1958
    %2255 = vmatpush1.bf16.msra.mxu0 %v1957
    %2256 = vmatprep.subr.bf16.mxu0 %v1962
    %2257 = vmatpush1.bf16.msra.mxu0 %v1961
    %2258 = vmatprep.subr.bf16.mxu0 %v1966
    %2259 = vmatpush1.bf16.msra.mxu0 %v1965
    %2260 = vmatprep.subr.bf16.mxu0 %v1970
    %2261 = vmatpush1.bf16.msra.mxu0 %v1969
    %2262 = vmatprep.subr.bf16.mxu0 %v1974
    %2263 = vmatpush1.bf16.msra.mxu0 %v1973
    %2264 = vmatprep.mubr.bf16.mxu0 %v1312
    %2265 = vmatmul.mubr.bf16.gmra.mrb[0].mxu0 %v1311
    %v2266 = vpop.f32.mrb[0].mxu0
    %v2267 = vadd.f32 %v2224, %v2266
    %v2268 = vpop.f32.mrb[0].mxu0
    %v2269 = vadd.f32 %v2226, %v2268
    %v2270 = vpop.f32.mrb[0].mxu0
    %v2271 = vadd.f32 %v2228, %v2270
    %v2272 = vpop.f32.mrb[0].mxu0
    %v2273 = vadd.f32 %v2230, %v2272
    %2274 = vdwg.mxu0
    %v2275 = vmul.f32 %v2181, 0.01
    %v2276 = vmul.f32 %v2183, 0.01
    %v2277 = vmul.f32 %v2267, 0.01
    %v2278 = vmul.f32 %v2269, 0.01
    %v2279 = vmul.f32 %v2185, 0.01
    %v2280 = vmul.f32 %v2187, 0.01
    %v2281 = vmul.f32 %v2271, 0.01
    %v2282 = vmul.f32 %v2273, 0.01
    %v2283 = vmax.f32 %v2181, %v2275
    %v2284 = vmax.f32 %v2183, %v2276
    %v2285 = vmax.f32 %v2267, %v2277
    %v2286 = vmax.f32 %v2269, %v2278
    %v2287 = vmax.f32 %v2185, %v2279
    %v2288 = vmax.f32 %v2187, %v2280
    %v2289 = vmax.f32 %v2271, %v2281
    %v2290 = vmax.f32 %v2273, %v2282
    %v2291 = vpack.c.bf16 %v2287, %v2283
    %v2292 = vpack.c.bf16 %v2288, %v2284
    %v2293 = vpack.c.bf16 %v2289, %v2285
    %v2294 = vpack.c.bf16 %v2290, %v2286
    %v2295 = vld [vmem:[#allocation7] sm:$0xf]
    %v2296 = vld [vmem:[#allocation7 + $0x4] sm:$0xf]
    %v2297 = vld [vmem:[#allocation7 + $0x8] sm:$0xf]
    %v2298 = vld [vmem:[#allocation7 + $0xc] sm:$0xf]
    %v2299 = vld [vmem:[#allocation7 + $0x10] sm:$0xf]
    %v2300 = vld [vmem:[#allocation7 + $0x14] sm:$0xf]
    %v2301 = vld [vmem:[#allocation7 + $0x18] sm:$0xf]
    %v2302 = vld [vmem:[#allocation7 + $0x1c] sm:$0xf]
    %v2303 = vld [vmem:[#allocation7 + $0x20] sm:$0xf]
    %v2304 = vld [vmem:[#allocation7 + $0x24] sm:$0xf]
    %v2305 = vld [vmem:[#allocation7 + $0x28] sm:$0xf]
    %v2306 = vld [vmem:[#allocation7 + $0x2c] sm:$0xf]
    %v2307 = vld [vmem:[#allocation7 + $0x30] sm:$0xf]
    %v2308 = vld [vmem:[#allocation7 + $0x34] sm:$0xf]
    %v2309 = vld [vmem:[#allocation7 + $0x38] sm:$0xf]
    %v2310 = vld [vmem:[#allocation7 + $0x3c] sm:$0xf]
    %v2311 = vld [vmem:[#allocation7 + $0x40] sm:$0xf]
    %v2312 = vld [vmem:[#allocation7 + $0x44] sm:$0xf]
    %v2313 = vld [vmem:[#allocation7 + $0x48] sm:$0xf]
    %v2314 = vld [vmem:[#allocation7 + $0x4c] sm:$0xf]
    %v2315 = vld [vmem:[#allocation7 + $0x50] sm:$0xf]
    %v2316 = vld [vmem:[#allocation7 + $0x54] sm:$0xf]
    %v2317 = vld [vmem:[#allocation7 + $0x58] sm:$0xf]
    %v2318 = vld [vmem:[#allocation7 + $0x5c] sm:$0xf]
    %v2319 = vld [vmem:[#allocation7 + $0x60] sm:$0xf]
    %v2320 = vld [vmem:[#allocation7 + $0x64] sm:$0xf]
    %v2321 = vld [vmem:[#allocation7 + $0x68] sm:$0xf]
    %v2322 = vld [vmem:[#allocation7 + $0x6c] sm:$0xf]
    %v2323 = vld [vmem:[#allocation7 + $0x70] sm:$0xf]
    %v2324 = vld [vmem:[#allocation7 + $0x74] sm:$0xf]
    %v2325 = vld [vmem:[#allocation7 + $0x78] sm:$0xf]
    %v2326 = vld [vmem:[#allocation7 + $0x7c] sm:$0xf]
    %v2327 = vld [vmem:[#allocation7 + $0x80] sm:$0xf]
    %v2328 = vld [vmem:[#allocation7 + $0x84] sm:$0xf]
    %v2329 = vld [vmem:[#allocation7 + $0x88] sm:$0xf]
    %v2330 = vld [vmem:[#allocation7 + $0x8c] sm:$0xf]
    %v2331 = vld [vmem:[#allocation7 + $0x90] sm:$0xf]
    %v2332 = vld [vmem:[#allocation7 + $0x94] sm:$0xf]
    %v2333 = vld [vmem:[#allocation7 + $0x98] sm:$0xf]
    %v2334 = vld [vmem:[#allocation7 + $0x9c] sm:$0xf]
    %v2335 = vld [vmem:[#allocation7 + $0xa0] sm:$0xf]
    %v2336 = vld [vmem:[#allocation7 + $0xa4] sm:$0xf]
    %v2337 = vld [vmem:[#allocation7 + $0xa8] sm:$0xf]
    %v2338 = vld [vmem:[#allocation7 + $0xac] sm:$0xf]
    %v2339 = vld [vmem:[#allocation7 + $0xb0] sm:$0xf]
    %v2340 = vld [vmem:[#allocation7 + $0xb4] sm:$0xf]
    %v2341 = vld [vmem:[#allocation7 + $0xb8] sm:$0xf]
    %v2342 = vld [vmem:[#allocation7 + $0xbc] sm:$0xf]
    %v2343 = vld [vmem:[#allocation7 + $0xc0] sm:$0xf]
    %v2344 = vld [vmem:[#allocation7 + $0xc4] sm:$0xf]
    %v2345 = vld [vmem:[#allocation7 + $0xc8] sm:$0xf]
    %v2346 = vld [vmem:[#allocation7 + $0xcc] sm:$0xf]
    %v2347 = vld [vmem:[#allocation7 + $0xd0] sm:$0xf]
    %v2348 = vld [vmem:[#allocation7 + $0xd4] sm:$0xf]
    %v2349 = vld [vmem:[#allocation7 + $0xd8] sm:$0xf]
    %v2350 = vld [vmem:[#allocation7 + $0xdc] sm:$0xf]
    %v2351 = vld [vmem:[#allocation7 + $0xe0] sm:$0xf]
    %v2352 = vld [vmem:[#allocation7 + $0xe4] sm:$0xf]
    %v2353 = vld [vmem:[#allocation7 + $0xe8] sm:$0xf]
    %v2354 = vld [vmem:[#allocation7 + $0xec] sm:$0xf]
    %v2355 = vld [vmem:[#allocation7 + $0xf0] sm:$0xf]
    %v2356 = vld [vmem:[#allocation7 + $0xf4] sm:$0xf]
    %v2357 = vld [vmem:[#allocation7 + $0xf8] sm:$0xf]
    %v2358 = vld [vmem:[#allocation7 + $0xfc] sm:$0xf]
    %v2359 = vld [vmem:[%s10] sm:$0x1]
    %v2361 = vlaneseq
    %v2362 = vshrl.u32 %v2361, 7
    %v2363 = vsub.s32 0, %v2362
    %v2364 = vrot.slane %v2359, %v2363
    %v2430 = vunpack.c.l.b16 %v2295
    %v2431 = vunpack.c.l.b16 %v2296
    %v2432 = vunpack.c.l.b16 %v2297
    %v2433 = vunpack.c.l.b16 %v2298
    %v2434 = vunpack.c.l.b16 %v2299
    %v2435 = vunpack.c.l.b16 %v2300
    %v2436 = vunpack.c.l.b16 %v2301
    %v2437 = vunpack.c.l.b16 %v2302
    %v2438 = vunpack.c.l.b16 %v2303
    %v2439 = vunpack.c.l.b16 %v2304
    %v2440 = vunpack.c.l.b16 %v2305
    %v2441 = vunpack.c.l.b16 %v2306
    %v2442 = vunpack.c.l.b16 %v2307
    %v2443 = vunpack.c.l.b16 %v2308
    %v2444 = vunpack.c.l.b16 %v2309
    %v2445 = vunpack.c.l.b16 %v2310
    %v2446 = vunpack.c.l.b16 %v2311
    %v2447 = vunpack.c.l.b16 %v2312
    %v2448 = vunpack.c.l.b16 %v2313
    %v2449 = vunpack.c.l.b16 %v2314
    %v2450 = vunpack.c.l.b16 %v2315
    %v2451 = vunpack.c.l.b16 %v2316
    %v2452 = vunpack.c.l.b16 %v2317
    %v2453 = vunpack.c.l.b16 %v2318
    %v2454 = vunpack.c.l.b16 %v2319
    %v2455 = vunpack.c.l.b16 %v2320
    %v2456 = vunpack.c.l.b16 %v2321
    %v2457 = vunpack.c.l.b16 %v2322
    %v2458 = vunpack.c.l.b16 %v2323
    %v2459 = vunpack.c.l.b16 %v2324
    %v2460 = vunpack.c.l.b16 %v2325
    %v2461 = vunpack.c.l.b16 %v2326
    %v2462 = vunpack.c.l.b16 %v2327
    %v2463 = vunpack.c.l.b16 %v2328
    %v2464 = vunpack.c.l.b16 %v2329
    %v2465 = vunpack.c.l.b16 %v2330
    %v2466 = vunpack.c.l.b16 %v2331
    %v2467 = vunpack.c.l.b16 %v2332
    %v2468 = vunpack.c.l.b16 %v2333
    %v2469 = vunpack.c.l.b16 %v2334
    %v2470 = vunpack.c.l.b16 %v2335
    %v2471 = vunpack.c.l.b16 %v2336
    %v2472 = vunpack.c.l.b16 %v2337
    %v2473 = vunpack.c.l.b16 %v2338
    %v2474 = vunpack.c.l.b16 %v2339
    %v2475 = vunpack.c.l.b16 %v2340
    %v2476 = vunpack.c.l.b16 %v2341
    %v2477 = vunpack.c.l.b16 %v2342
    %v2478 = vunpack.c.l.b16 %v2343
    %v2479 = vunpack.c.l.b16 %v2344
    %v2480 = vunpack.c.l.b16 %v2345
    %v2481 = vunpack.c.l.b16 %v2346
    %v2482 = vunpack.c.l.b16 %v2347
    %v2483 = vunpack.c.l.b16 %v2348
    %v2484 = vunpack.c.l.b16 %v2349
    %v2485 = vunpack.c.l.b16 %v2350
    %v2486 = vunpack.c.l.b16 %v2351
    %v2487 = vunpack.c.l.b16 %v2352
    %v2488 = vunpack.c.l.b16 %v2353
    %v2489 = vunpack.c.l.b16 %v2354
    %v2490 = vunpack.c.l.b16 %v2355
    %v2491 = vunpack.c.l.b16 %v2356
    %v2492 = vunpack.c.l.b16 %v2357
    %v2493 = vunpack.c.l.b16 %v2358
    %v2494 = vpack.c.b16 %v2431, %v2430
    %v2495 = vpack.c.b16 %v2433, %v2432
    %v2496 = vpack.c.b16 %v2435, %v2434
    %v2497 = vpack.c.b16 %v2437, %v2436
    %v2498 = vpack.c.b16 %v2439, %v2438
    %v2499 = vpack.c.b16 %v2441, %v2440
    %v2500 = vpack.c.b16 %v2443, %v2442
    %v2501 = vpack.c.b16 %v2445, %v2444
    %v2502 = vpack.c.b16 %v2447, %v2446
    %v2503 = vpack.c.b16 %v2449, %v2448
    %v2504 = vpack.c.b16 %v2451, %v2450
    %v2505 = vpack.c.b16 %v2453, %v2452
    %v2506 = vpack.c.b16 %v2455, %v2454
    %v2507 = vpack.c.b16 %v2457, %v2456
    %v2508 = vpack.c.b16 %v2459, %v2458
    %v2509 = vpack.c.b16 %v2461, %v2460
    %v2510 = vpack.c.b16 %v2463, %v2462
    %v2511 = vpack.c.b16 %v2465, %v2464
    %v2512 = vpack.c.b16 %v2467, %v2466
    %v2513 = vpack.c.b16 %v2469, %v2468
    %v2514 = vpack.c.b16 %v2471, %v2470
    %v2515 = vpack.c.b16 %v2473, %v2472
    %v2516 = vpack.c.b16 %v2475, %v2474
    %v2517 = vpack.c.b16 %v2477, %v2476
    %v2518 = vpack.c.b16 %v2479, %v2478
    %v2519 = vpack.c.b16 %v2481, %v2480
    %v2520 = vpack.c.b16 %v2483, %v2482
    %v2521 = vpack.c.b16 %v2485, %v2484
    %v2522 = vpack.c.b16 %v2487, %v2486
    %v2523 = vpack.c.b16 %v2489, %v2488
    %v2524 = vpack.c.b16 %v2491, %v2490
    %v2525 = vpack.c.b16 %v2493, %v2492
    %2558 = vmatprep.subr.bf16.mxu0 0
    %2559 = vmatpush1.bf16.msra.mxu0 %v2494
    %2560 = vmatprep.subr.bf16.mxu0 0
    %2561 = vmatpush1.bf16.msra.mxu0 %v2495
    %2562 = vmatprep.subr.bf16.mxu0 0
    %2563 = vmatpush1.bf16.msra.mxu0 %v2496
    %2564 = vmatprep.subr.bf16.mxu0 0
    %2565 = vmatpush1.bf16.msra.mxu0 %v2497
    %2566 = vmatprep.subr.bf16.mxu0 0
    %2567 = vmatpush1.bf16.msra.mxu0 %v2498
    %2568 = vmatprep.subr.bf16.mxu0 0
    %2569 = vmatpush1.bf16.msra.mxu0 %v2499
    %2570 = vmatprep.subr.bf16.mxu0 0
    %2571 = vmatpush1.bf16.msra.mxu0 %v2500
    %2572 = vmatprep.subr.bf16.mxu0 0
    %2573 = vmatpush1.bf16.msra.mxu0 %v2501
    %2574 = vmatprep.subr.bf16.mxu0 0
    %2575 = vmatpush1.bf16.msra.mxu0 %v2502
    %2576 = vmatprep.subr.bf16.mxu0 0
    %2577 = vmatpush1.bf16.msra.mxu0 %v2503
    %2578 = vmatprep.subr.bf16.mxu0 0
    %2579 = vmatpush1.bf16.msra.mxu0 %v2504
    %2580 = vmatprep.subr.bf16.mxu0 0
    %2581 = vmatpush1.bf16.msra.mxu0 %v2505
    %2582 = vmatprep.subr.bf16.mxu0 0
    %2583 = vmatpush1.bf16.msra.mxu0 %v2506
    %2584 = vmatprep.subr.bf16.mxu0 0
    %2585 = vmatpush1.bf16.msra.mxu0 %v2507
    %2586 = vmatprep.subr.bf16.mxu0 0
    %2587 = vmatpush1.bf16.msra.mxu0 %v2508
    %2588 = vmatprep.subr.bf16.mxu0 0
    %2589 = vmatpush1.bf16.msra.mxu0 %v2509
    %2590 = vmatprep.mubr.bf16.mxu0 %v2292
    %2591 = vmatmul.mubr.bf16.gmra.mrb[0].mxu0 %v2291
    %v2592 = vpop.f32.mrb[0].mxu0
    %v2593 = vadd.f32 %v2364, %v2592
    %v2594 = vpop.f32.mrb[0].mxu0
    %v2595 = vpop.f32.mrb[0].mxu0
    %v2596 = vadd.f32 %v2364, %v2595
    %v2597 = vpop.f32.mrb[0].mxu0
    %2598 = vdwg.mxu0
    %2599 = vmatprep.subr.bf16.mxu0 0
    %2600 = vmatpush1.bf16.msra.mxu0 %v2510
    %2601 = vmatprep.subr.bf16.mxu0 0
    %2602 = vmatpush1.bf16.msra.mxu0 %v2511
    %2603 = vmatprep.subr.bf16.mxu0 0
    %2604 = vmatpush1.bf16.msra.mxu0 %v2512
    %2605 = vmatprep.subr.bf16.mxu0 0
    %2606 = vmatpush1.bf16.msra.mxu0 %v2513
    %2607 = vmatprep.subr.bf16.mxu0 0
    %2608 = vmatpush1.bf16.msra.mxu0 %v2514
    %2609 = vmatprep.subr.bf16.mxu0 0
    %2610 = vmatpush1.bf16.msra.mxu0 %v2515
    %2611 = vmatprep.subr.bf16.mxu0 0
    %2612 = vmatpush1.bf16.msra.mxu0 %v2516
    %2613 = vmatprep.subr.bf16.mxu0 0
    %2614 = vmatpush1.bf16.msra.mxu0 %v2517
    %2615 = vmatprep.subr.bf16.mxu0 0
    %2616 = vmatpush1.bf16.msra.mxu0 %v2518
    %2617 = vmatprep.subr.bf16.mxu0 0
    %2618 = vmatpush1.bf16.msra.mxu0 %v2519
    %2619 = vmatprep.subr.bf16.mxu0 0
    %2620 = vmatpush1.bf16.msra.mxu0 %v2520
    %2621 = vmatprep.subr.bf16.mxu0 0
    %2622 = vmatpush1.bf16.msra.mxu0 %v2521
    %2623 = vmatprep.subr.bf16.mxu0 0
    %2624 = vmatpush1.bf16.msra.mxu0 %v2522
    %2625 = vmatprep.subr.bf16.mxu0 0
    %2626 = vmatpush1.bf16.msra.mxu0 %v2523
    %2627 = vmatprep.subr.bf16.mxu0 0
    %2628 = vmatpush1.bf16.msra.mxu0 %v2524
    %2629 = vmatprep.subr.bf16.mxu0 0
    %2630 = vmatpush1.bf16.msra.mxu0 %v2525
    %2631 = vmatprep.mubr.bf16.mxu0 %v2294
    %2632 = vmatmul.mubr.bf16.gmra.mrb[0].mxu0 %v2293
    %v2633 = vpop.f32.mrb[0].mxu0
    %v2634 = vadd.f32 %v2593, %v2633
    %v2635 = vpop.f32.mrb[0].mxu0
    %v2636 = vpop.f32.mrb[0].mxu0
    %v2637 = vadd.f32 %v2596, %v2636
    %v2638 = vpop.f32.mrb[0].mxu0
    %2639 = vdwg.mxu0
    %2640 = vst [vmem:[%s11] sm:$0xff] %v2634
    %2641 = vst [vmem:[%s11 + $0x8] sm:$0xff] %v2637
    // Predicated region
    $region62: #{mnist_dis_forward.1} parent=1 // pred_check
      _
    $region63: #{mnist_dis_forward.1} parent=1 // pred_check_branch
      %2643 = sbr.rel (0) target = $region65
    $region64: #{mnist_dis_forward.1} parent=1 // pred_region
      _
    $region65: #{mnist_dis_forward.1} parent=1 // pred_fallthru
      _
    // Predicated region
    $region66: #{mnist_dis_forward.1} parent=1 // pred_check
      _
    $region67: #{mnist_dis_forward.1} parent=1 // pred_check_branch
      %2645 = sbr.rel (0) target = $region69
    $region68: #{mnist_dis_forward.1} parent=1 // pred_region
      _
    $region69: #{mnist_dis_forward.1} parent=1 // pred_fallthru
      _
    %2646 = vsyncpa [#allocation3], 1
    %2647 = vsyncpa [#allocation5], 1
    %2648 = vsyncpa [#allocation8], 1

</llo_original>
